<compile_context>
chip_gen: v7x
topology: tpu7x:2x2x1
jax: 0.10.0
libtpu: 0.0.40
codegen_flags: <defaults>
</compile_context>

<pallas_src>
import jax
import jax.numpy as jnp
from jax.experimental import pallas as pl
from jax.experimental.pallas import tpu as pltpu

MATMUL_DTYPE = jnp.bfloat16       # MXU operand dtype; accumulate/epilogue stay f32
VMEM_LIMIT = 32 * 1024 * 1024     # safe scoped limit on v5e/v6e/v7x


def _row_grid(M, target=1024):
    """Largest row block <= target that is a multiple of 16 and divides M,
    preferring >= 2 grid steps (so v7x's dual TensorCores both get work)."""
    cands = [d for d in range(16, min(M, target) + 1, 16) if M % d == 0]
    if not cands:
        return M, 1
    two_step = [d for d in cands if M // d >= 2]
    bm = max(two_step) if two_step else max(cands)
    return bm, M // bm


# ---------------------------------------------------------------------------
# Pallas kernels
# ---------------------------------------------------------------------------
def _conv_pool_kernel(a_ref, w_ref, b_ref, o_ref):
    """Fused conv (im2col matmul, BN + residual pre-folded into w/b) + bias +
    ReLU + 2x2 max-pool.  a_ref: (4, bm, K) = the 4 pool-window slabs."""
    w = w_ref[...]

    def mm(a):
        return jnp.dot(a, w, preferred_element_type=jnp.float32)

    z = jnp.maximum(jnp.maximum(mm(a_ref[0]), mm(a_ref[1])),
                    jnp.maximum(mm(a_ref[2]), mm(a_ref[3])))
    o_ref[...] = jnp.maximum(z + b_ref[...], 0.0).astype(o_ref.dtype)


def _fc_kernel(x_ref, w1_ref, b1_ref, w2_ref, b2_ref, o_ref):
    """Fused fc1 + ReLU + fc2 (dropout is identity in eval mode)."""
    h = jnp.dot(x_ref[...], w1_ref[...], preferred_element_type=jnp.float32)
    h = jnp.maximum(h + b1_ref[...], 0.0).astype(MATMUL_DTYPE)
    y = jnp.dot(h, w2_ref[...], preferred_element_type=jnp.float32) + b2_ref[...]
    o_ref[...] = y.astype(o_ref.dtype)


# ---------------------------------------------------------------------------
# Pallas wrappers
# ---------------------------------------------------------------------------
def conv_pool(a_stack, w, b):
    """a_stack: (4, M, K) bf16 pool-window im2col slabs -> (M, N) bf16."""
    _, M, K = a_stack.shape
    N = w.shape[1]
    bm, g = _row_grid(M)
    return pl.pallas_call(
        _conv_pool_kernel,
        out_shape=jax.ShapeDtypeStruct((M, N), jnp.bfloat16),
        grid_spec=pltpu.PrefetchScalarGridSpec(
            num_scalar_prefetch=0, grid=(g,),
            in_specs=[
                pl.BlockSpec((4, bm, K), lambda i: (0, i, 0)),
                pl.BlockSpec((K, N), lambda i: (0, 0)),
                pl.BlockSpec((1, N), lambda i: (0, 0)),
            ],
            out_specs=pl.BlockSpec((bm, N), lambda i: (i, 0))),
        compiler_params=pltpu.CompilerParams(
            dimension_semantics=("parallel",),
            vmem_limit_bytes=VMEM_LIMIT),
    )(a_stack, w, b)


def fc_fused(x, w1, b1, w2, b2):
    B = x.shape[0]
    N = w2.shape[1]
    return pl.pallas_call(
        _fc_kernel,
        out_shape=jax.ShapeDtypeStruct((B, N), jnp.float32),
        in_specs=[pl.BlockSpec(memory_space=pltpu.MemorySpace.VMEM)] * 5,
        out_specs=pl.BlockSpec(memory_space=pltpu.MemorySpace.VMEM),
        compiler_params=pltpu.CompilerParams(vmem_limit_bytes=VMEM_LIMIT),
    )(x, w1, b1, w2, b2)


# ---------------------------------------------------------------------------
# Host-side glue (im2col, pool-window slabs, one-time parameter folding)
# ---------------------------------------------------------------------------
def _im2col_3x3_reflect_nhwc(x):
    """(B,H,W,C) -> (B,H,W,C*9) patches, reflect pad=1, column order (c, kh*3+kw)."""
    B, H, W, C = x.shape
    xp = jnp.pad(x, ((0, 0), (1, 1), (1, 1), (0, 0)), mode="reflect")
    cols = jnp.stack([xp[:, kh:kh + H, kw:kw + W, :]
                      for kh in range(3) for kw in range(3)], axis=-1)   # (B,H,W,C,9)
    return cols.reshape(B, H, W, C * 9)


def _pool_slabs_stacked(img):
    """(B,H,W,F) -> (4, B*H/2*W/2, F): the 4 positions of each 2x2 pool window.
    Row order of each slab (and of the kernel output) is (b, ho, wo)."""
    B, H, W, F = img.shape
    slabs = [img[:, dy::2, dx::2, :].reshape(B * (H // 2) * (W // 2), F)
             for dy in range(2) for dx in range(2)]
    return jnp.stack(slabs, axis=0)


def prepare_fused_params(p, input_shape, num_classes, eps=1e-5):
    """One-time host prep: fold BN into conv weights, fold the residual 1x1
    projection into conv2's center tap, permute fc1 columns to the
    channels-last (h, w, c) flatten order."""
    Cin, H, W = input_shape
    C1 = p["conv1_w"].shape[0]
    C2 = p["conv2_w"].shape[0]
    Ho2, Wo2 = H // 4, W // 4

    def bn_fold(w_mat, bias, gamma, beta, mean, var):
        scale = gamma / jnp.sqrt(var + eps)
        return w_mat * scale[None, :], (bias - mean) * scale + beta

    # conv1 (+bn1): (C1, Cin, 3, 3) -> (Cin*9, C1), rows ordered (c, kh*3+kw)
    w1 = p["conv1_w"].reshape(C1, Cin * 9).T
    w1, b1 = bn_fold(w1, p["conv1_b"], p["bn1_gamma"], p["bn1_beta"],
                     p["bn1_mean"], p["bn1_var"])

    # conv2 (+bn2): (C2, C1, 3, 3) -> (C1*9, C2)
    w2 = p["conv2_w"].reshape(C2, C1 * 9).T
    w2, b2 = bn_fold(w2, p["conv2_b"], p["bn2_gamma"], p["bn2_beta"],
                     p["bn2_mean"], p["bn2_var"])

    # residual 1x1 projection (identity when hidden dims match), folded into the
    # 3x3 center tap: rows c*9 + 4 in the (c, kh*3+kw) ordering.  Exact because
    # the residual is added after bn2 and before ReLU/pool, on the same pixel
    # the center tap reads (padding=1 -> center of window (h,w) is input (h,w)).
    if "resproj_w" in p:
        wr = p["resproj_w"].reshape(C2, C1).T                     # (C1, C2)
        br = p["resproj_b"]
    else:
        wr = jnp.eye(C1, dtype=jnp.float32)
        br = jnp.zeros((C2,), jnp.float32)
    w2 = w2.at[4::9, :].add(wr)
    b2 = b2 + br

    # fc1: permute columns from PyTorch NCHW flatten (c,h,w) to (h,w,c) flatten
    f1 = (p["fc1_w"].reshape(128, C2, Ho2, Wo2)
          .transpose(2, 3, 1, 0)
          .reshape(Ho2 * Wo2 * C2, 128))
    f2 = p["fc2_w"].T                                             # (128, num_classes)

    return {
        "w1": w1.astype(MATMUL_DTYPE), "b1": b1.reshape(1, C1).astype(jnp.float32),
        "w2": w2.astype(MATMUL_DTYPE), "b2": b2.reshape(1, C2).astype(jnp.float32),
        "fc1_w": f1.astype(MATMUL_DTYPE),
        "fc1_b": p["fc1_b"].reshape(1, 128).astype(jnp.float32),
        "fc2_w": f2.astype(MATMUL_DTYPE),
        "fc2_b": p["fc2_b"].reshape(1, num_classes).astype(jnp.float32),
    }


def init_params(key, input_shape, hidden_dims, num_classes):
    cin = input_shape[0]
    h1, h2 = hidden_dims
    conv_out = (input_shape[1] // 4) * (input_shape[2] // 4) * h2
    ks = jax.random.split(key, 10)
    p = {
        "conv1_w": 0.05 * jax.random.normal(ks[0], (h1, cin, 3, 3), jnp.float32),
        "conv1_b": 0.05 * jax.random.normal(ks[1], (h1,), jnp.float32),
        "bn1_gamma": 1.0 + 0.05 * jax.random.normal(ks[2], (h1,), jnp.float32),
        "bn1_beta": 0.05 * jax.random.normal(ks[3], (h1,), jnp.float32),
        "bn1_mean": jnp.zeros((h1,), jnp.float32),
        "bn1_var": jnp.ones((h1,), jnp.float32),
        "conv2_w": 0.05 * jax.random.normal(ks[4], (h2, h1, 3, 3), jnp.float32),
        "conv2_b": 0.05 * jax.random.normal(ks[5], (h2,), jnp.float32),
        "bn2_gamma": 1.0 + 0.05 * jax.random.normal(ks[6], (h2,), jnp.float32),
        "bn2_beta": 0.05 * jax.random.normal(ks[7], (h2,), jnp.float32),
        "bn2_mean": jnp.zeros((h2,), jnp.float32),
        "bn2_var": jnp.ones((h2,), jnp.float32),
        "fc1_w": 0.05 * jax.random.normal(ks[8], (128, conv_out), jnp.float32),
        "fc1_b": jnp.zeros((128,), jnp.float32),
        "fc2_w": 0.05 * jax.random.normal(ks[9], (num_classes, 128), jnp.float32),
        "fc2_b": jnp.zeros((num_classes,), jnp.float32),
    }
    if h1 != h2:
        kp = jax.random.split(ks[0], 2)
        p["resproj_w"] = 0.05 * jax.random.normal(kp[0], (h2, h1, 1, 1), jnp.float32)
        p["resproj_b"] = 0.05 * jax.random.normal(kp[1], (h2,), jnp.float32)
    return p


# ---------------------------------------------------------------------------
# Forward pass (eval-mode _forward_impl)
# ---------------------------------------------------------------------------
def baseline_cnn_forward(x_nchw, fused):
    B, Cin, H, W = x_nchw.shape

    # single entry transpose -> NHWC, bf16 matmul operands
    x = jnp.transpose(x_nchw, (0, 2, 3, 1)).astype(MATMUL_DTYPE)

    # stage 1: conv1 + bn1 + relu (+ dropout = identity in eval) + maxpool2  (1 kernel)
    a1 = _pool_slabs_stacked(_im2col_3x3_reflect_nhwc(x))       # (4, B*H/2*W/2, Cin*9)
    p1 = conv_pool(a1, fused["w1"], fused["b1"])                # (B*H/2*W/2, C1) bf16
    p1_img = p1.reshape(B, H // 2, W // 2, -1)
    # TODO(synk): nn.Dropout is identity in eval mode; train-mode dropout not implemented.

    # stage 2: conv2 + bn2 + residual (folded into center tap) + relu + maxpool2  (1 kernel)
    a2 = _pool_slabs_stacked(_im2col_3x3_reflect_nhwc(p1_img))  # (4, B*H/4*W/4, C1*9)
    p2 = conv_pool(a2, fused["w2"], fused["b2"])                # (B*H/4*W/4, C2) bf16

    # flatten (h, w, c order; fc1 columns were permuted to match) + fc1/relu/fc2
    flat = p2.reshape(B, -1)                                    # (B, H/4*W/4*C2) bf16
    out = fc_fused(flat, fused["fc1_w"], fused["fc1_b"],
                   fused["fc2_w"], fused["fc2_b"])              # (B, num_classes) f32
    # TODO(synk): FGSM adversarial branch (training-only, needs autograd loop) not implemented.
    return out


if __name__ == "__main__":
    key = jax.random.PRNGKey(0)
    kx, kp = jax.random.split(key)

    input_shape = [4, 16, 16]      # (C, H, W)
    hidden_dims = [8, 16]
    num_classes = 10
    batch = 2

    x = jax.random.uniform(kx, (batch, *input_shape), jnp.float32)   # NCHW
    params = init_params(kp, input_shape, hidden_dims, num_classes)
    fused = prepare_fused_params(params, input_shape, num_classes)   # one-time host prep

    fwd = jax.jit(baseline_cnn_forward)
    logits = jax.block_until_ready(fwd(x, fused))

    assert logits.shape == (batch, num_classes)
    assert bool(jnp.all(jnp.isfinite(logits)))
    print("KERNEL_OK")
</pallas_src>

<mosaic_0001>
module attributes {stable_mosaic.version = 11 : i64} {
  func.func @_conv_pool_kernel(%arg0: i32, %arg1: memref<4x64x36xbf16, #tpu.memory_space<vmem>>, %arg2: memref<36x8xbf16, #tpu.memory_space<vmem>>, %arg3: memref<1x8xf32, #tpu.memory_space<vmem>>, %arg4: memref<64x8xbf16, #tpu.memory_space<vmem>>) attributes {dimension_semantics = [#tpu.dimension_semantics<parallel>], iteration_bounds = array<i64: 2>, scalar_prefetch = 0 : i64, scratch_operands = 0 : i64, tpu.core_type = #tpu.core_type<tc>, window_params = [{transform_indices = @transform_0, window_bounds = array<i64: 4, 64, 36>}, {pipeline_mode = #tpu.pipeline_mode<synchronous>, transform_indices = @transform_1, window_bounds = array<i64: 36, 8>}, {pipeline_mode = #tpu.pipeline_mode<synchronous>, transform_indices = @transform_2, window_bounds = array<i64: 1, 8>}, {transform_indices = @transform_3, window_bounds = array<i64: 64, 8>}]} {
    %c0 = arith.constant 0 : index
    %c0_0 = arith.constant 0 : index
    %0 = vector.load %arg2[%c0, %c0_0] : memref<36x8xbf16, #tpu.memory_space<vmem>>, vector<36x8xbf16>
    %c0_1 = arith.constant 0 : index
    %c0_2 = arith.constant 0 : index
    %c0_3 = arith.constant 0 : index
    %1 = vector.load %arg1[%c0_1, %c0_2, %c0_3] : memref<4x64x36xbf16, #tpu.memory_space<vmem>>, vector<1x64x36xbf16>
    %2 = vector.shape_cast %1 : vector<1x64x36xbf16> to vector<64x36xbf16>
    %cst = arith.constant dense<0.000000e+00> : vector<64x8xf32>
    %3 = tpu.matmul %2, %0, %cst {dimension_numbers = #tpu.dot_dimension_numbers<[1], [0], [0], [1], [0, 0, 1, 1], [], []>} : vector<64x36xbf16>, vector<36x8xbf16>, vector<64x8xf32> -> vector<64x8xf32>
    %c1 = arith.constant 1 : index
    %c0_4 = arith.constant 0 : index
    %c0_5 = arith.constant 0 : index
    %4 = vector.load %arg1[%c1, %c0_4, %c0_5] : memref<4x64x36xbf16, #tpu.memory_space<vmem>>, vector<1x64x36xbf16>
    %5 = vector.shape_cast %4 : vector<1x64x36xbf16> to vector<64x36xbf16>
    %cst_6 = arith.constant dense<0.000000e+00> : vector<64x8xf32>
    %6 = tpu.matmul %5, %0, %cst_6 {dimension_numbers = #tpu.dot_dimension_numbers<[1], [0], [0], [1], [0, 0, 1, 1], [], []>} : vector<64x36xbf16>, vector<36x8xbf16>, vector<64x8xf32> -> vector<64x8xf32>
    %7 = arith.maximumf %3, %6 : vector<64x8xf32>
    %c2 = arith.constant 2 : index
    %c0_7 = arith.constant 0 : index
    %c0_8 = arith.constant 0 : index
    %8 = vector.load %arg1[%c2, %c0_7, %c0_8] : memref<4x64x36xbf16, #tpu.memory_space<vmem>>, vector<1x64x36xbf16>
    %9 = vector.shape_cast %8 : vector<1x64x36xbf16> to vector<64x36xbf16>
    %cst_9 = arith.constant dense<0.000000e+00> : vector<64x8xf32>
    %10 = tpu.matmul %9, %0, %cst_9 {dimension_numbers = #tpu.dot_dimension_numbers<[1], [0], [0], [1], [0, 0, 1, 1], [], []>} : vector<64x36xbf16>, vector<36x8xbf16>, vector<64x8xf32> -> vector<64x8xf32>
    %c3 = arith.constant 3 : index
    %c0_10 = arith.constant 0 : index
    %c0_11 = arith.constant 0 : index
    %11 = vector.load %arg1[%c3, %c0_10, %c0_11] : memref<4x64x36xbf16, #tpu.memory_space<vmem>>, vector<1x64x36xbf16>
    %12 = vector.shape_cast %11 : vector<1x64x36xbf16> to vector<64x36xbf16>
    %cst_12 = arith.constant dense<0.000000e+00> : vector<64x8xf32>
    %13 = tpu.matmul %12, %0, %cst_12 {dimension_numbers = #tpu.dot_dimension_numbers<[1], [0], [0], [1], [0, 0, 1, 1], [], []>} : vector<64x36xbf16>, vector<36x8xbf16>, vector<64x8xf32> -> vector<64x8xf32>
    %14 = arith.maximumf %10, %13 : vector<64x8xf32>
    %15 = arith.maximumf %7, %14 : vector<64x8xf32>
    %c0_13 = arith.constant 0 : index
    %c0_14 = arith.constant 0 : index
    %16 = vector.load %arg3[%c0_13, %c0_14] : memref<1x8xf32, #tpu.memory_space<vmem>>, vector<1x8xf32>
    %17 = vector.broadcast %16 : vector<1x8xf32> to vector<64x8xf32>
    %18 = arith.addf %15, %17 : vector<64x8xf32>
    %cst_15 = arith.constant 0.000000e+00 : f32
    %19 = vector.broadcast %cst_15 : f32 to vector<64x8xf32>
    %20 = arith.maximumf %18, %19 : vector<64x8xf32>
    %21 = arith.truncf %20 : vector<64x8xf32> to vector<64x8xbf16>
    %c0_16 = arith.constant 0 : index
    %c0_17 = arith.constant 0 : index
    %22 = vector.load %arg4[%c0_16, %c0_17] : memref<64x8xbf16, #tpu.memory_space<vmem>>, vector<64x8xbf16>
    tpu.vector_store %arg4[%c0_16, %c0_17], %21 {strides = array<i32>} : memref<64x8xbf16, #tpu.memory_space<vmem>>, vector<64x8xbf16>,
    return
  }
  func.func @transform_0(%arg0: i32) -> (i32, i32, i32) {
    %c0_i32 = arith.constant 0 : i32
    %c0_i32_0 = arith.constant 0 : i32
    %c0_i32_1 = arith.constant 0 : i32
    return %c0_i32, %arg0, %c0_i32_0 : i32, i32, i32
  }
  func.func @transform_1(%arg0: i32) -> (i32, i32) {
    %c0_i32 = arith.constant 0 : i32
    %c0_i32_0 = arith.constant 0 : i32
    %c0_i32_1 = arith.constant 0 : i32
    return %c0_i32, %c0_i32_0 : i32, i32
  }
  func.func @transform_2(%arg0: i32) -> (i32, i32) {
    %c0_i32 = arith.constant 0 : i32
    %c0_i32_0 = arith.constant 0 : i32
    %c0_i32_1 = arith.constant 0 : i32
    return %c0_i32, %c0_i32_0 : i32, i32
  }
  func.func @transform_3(%arg0: i32) -> (i32, i32) {
    %c0_i32 = arith.constant 0 : i32
    %c0_i32_0 = arith.constant 0 : i32
    return %arg0, %c0_i32 : i32, i32
  }
}

module attributes {stable_mosaic.version = 11 : i64} {
  func.func @_conv_pool_kernel(%arg0: i32, %arg1: memref<4x16x72xbf16, #tpu.memory_space<vmem>>, %arg2: memref<72x16xbf16, #tpu.memory_space<vmem>>, %arg3: memref<1x16xf32, #tpu.memory_space<vmem>>, %arg4: memref<16x16xbf16, #tpu.memory_space<vmem>>) attributes {dimension_semantics = [#tpu.dimension_semantics<parallel>], iteration_bounds = array<i64: 2>, scalar_prefetch = 0 : i64, scratch_operands = 0 : i64, tpu.core_type = #tpu.core_type<tc>, window_params = [{transform_indices = @transform_0, window_bounds = array<i64: 4, 16, 72>}, {pipeline_mode = #tpu.pipeline_mode<synchronous>, transform_indices = @transform_1, window_bounds = array<i64: 72, 16>}, {pipeline_mode = #tpu.pipeline_mode<synchronous>, transform_indices = @transform_2, window_bounds = array<i64: 1, 16>}, {transform_indices = @transform_3, window_bounds = array<i64: 16, 16>}]} {
    %c0 = arith.constant 0 : index
    %c0_0 = arith.constant 0 : index
    %0 = vector.load %arg2[%c0, %c0_0] : memref<72x16xbf16, #tpu.memory_space<vmem>>, vector<72x16xbf16>
    %c0_1 = arith.constant 0 : index
    %c0_2 = arith.constant 0 : index
    %c0_3 = arith.constant 0 : index
    %1 = vector.load %arg1[%c0_1, %c0_2, %c0_3] : memref<4x16x72xbf16, #tpu.memory_space<vmem>>, vector<1x16x72xbf16>
    %2 = vector.shape_cast %1 : vector<1x16x72xbf16> to vector<16x72xbf16>
    %cst = arith.constant dense<0.000000e+00> : vector<16x16xf32>
    %3 = tpu.matmul %2, %0, %cst {dimension_numbers = #tpu.dot_dimension_numbers<[1], [0], [0], [1], [0, 0, 1, 1], [], []>} : vector<16x72xbf16>, vector<72x16xbf16>, vector<16x16xf32> -> vector<16x16xf32>
    %c1 = arith.constant 1 : index
    %c0_4 = arith.constant 0 : index
    %c0_5 = arith.constant 0 : index
    %4 = vector.load %arg1[%c1, %c0_4, %c0_5] : memref<4x16x72xbf16, #tpu.memory_space<vmem>>, vector<1x16x72xbf16>
    %5 = vector.shape_cast %4 : vector<1x16x72xbf16> to vector<16x72xbf16>
    %cst_6 = arith.constant dense<0.000000e+00> : vector<16x16xf32>
    %6 = tpu.matmul %5, %0, %cst_6 {dimension_numbers = #tpu.dot_dimension_numbers<[1], [0], [0], [1], [0, 0, 1, 1], [], []>} : vector<16x72xbf16>, vector<72x16xbf16>, vector<16x16xf32> -> vector<16x16xf32>
    %7 = arith.maximumf %3, %6 : vector<16x16xf32>
    %c2 = arith.constant 2 : index
    %c0_7 = arith.constant 0 : index
    %c0_8 = arith.constant 0 : index
    %8 = vector.load %arg1[%c2, %c0_7, %c0_8] : memref<4x16x72xbf16, #tpu.memory_space<vmem>>, vector<1x16x72xbf16>
    %9 = vector.shape_cast %8 : vector<1x16x72xbf16> to vector<16x72xbf16>
    %cst_9 = arith.constant dense<0.000000e+00> : vector<16x16xf32>
    %10 = tpu.matmul %9, %0, %cst_9 {dimension_numbers = #tpu.dot_dimension_numbers<[1], [0], [0], [1], [0, 0, 1, 1], [], []>} : vector<16x72xbf16>, vector<72x16xbf16>, vector<16x16xf32> -> vector<16x16xf32>
    %c3 = arith.constant 3 : index
    %c0_10 = arith.constant 0 : index
    %c0_11 = arith.constant 0 : index
    %11 = vector.load %arg1[%c3, %c0_10, %c0_11] : memref<4x16x72xbf16, #tpu.memory_space<vmem>>, vector<1x16x72xbf16>
    %12 = vector.shape_cast %11 : vector<1x16x72xbf16> to vector<16x72xbf16>
    %cst_12 = arith.constant dense<0.000000e+00> : vector<16x16xf32>
    %13 = tpu.matmul %12, %0, %cst_12 {dimension_numbers = #tpu.dot_dimension_numbers<[1], [0], [0], [1], [0, 0, 1, 1], [], []>} : vector<16x72xbf16>, vector<72x16xbf16>, vector<16x16xf32> -> vector<16x16xf32>
    %14 = arith.maximumf %10, %13 : vector<16x16xf32>
    %15 = arith.maximumf %7, %14 : vector<16x16xf32>
    %c0_13 = arith.constant 0 : index
    %c0_14 = arith.constant 0 : index
    %16 = vector.load %arg3[%c0_13, %c0_14] : memref<1x16xf32, #tpu.memory_space<vmem>>, vector<1x16xf32>
    %17 = vector.broadcast %16 : vector<1x16xf32> to vector<16x16xf32>
    %18 = arith.addf %15, %17 : vector<16x16xf32>
    %cst_15 = arith.constant 0.000000e+00 : f32
    %19 = vector.broadcast %cst_15 : f32 to vector<16x16xf32>
    %20 = arith.maximumf %18, %19 : vector<16x16xf32>
    %21 = arith.truncf %20 : vector<16x16xf32> to vector<16x16xbf16>
    %c0_16 = arith.constant 0 : index
    %c0_17 = arith.constant 0 : index
    %22 = vector.load %arg4[%c0_16, %c0_17] : memref<16x16xbf16, #tpu.memory_space<vmem>>, vector<16x16xbf16>
    tpu.vector_store %arg4[%c0_16, %c0_17], %21 {strides = array<i32>} : memref<16x16xbf16, #tpu.memory_space<vmem>>, vector<16x16xbf16>,
    return
  }
  func.func @transform_0(%arg0: i32) -> (i32, i32, i32) {
    %c0_i32 = arith.constant 0 : i32
    %c0_i32_0 = arith.constant 0 : i32
    %c0_i32_1 = arith.constant 0 : i32
    return %c0_i32, %arg0, %c0_i32_0 : i32, i32, i32
  }
  func.func @transform_1(%arg0: i32) -> (i32, i32) {
    %c0_i32 = arith.constant 0 : i32
    %c0_i32_0 = arith.constant 0 : i32
    %c0_i32_1 = arith.constant 0 : i32
    return %c0_i32, %c0_i32_0 : i32, i32
  }
  func.func @transform_2(%arg0: i32) -> (i32, i32) {
    %c0_i32 = arith.constant 0 : i32
    %c0_i32_0 = arith.constant 0 : i32
    %c0_i32_1 = arith.constant 0 : i32
    return %c0_i32, %c0_i32_0 : i32, i32
  }
  func.func @transform_3(%arg0: i32) -> (i32, i32) {
    %c0_i32 = arith.constant 0 : i32
    %c0_i32_0 = arith.constant 0 : i32
    return %arg0, %c0_i32 : i32, i32
  }
}

module attributes {stable_mosaic.version = 11 : i64} {
  func.func @_fc_kernel(%arg0: memref<2x256xbf16, #tpu.memory_space<vmem>>, %arg1: memref<256x128xbf16, #tpu.memory_space<vmem>>, %arg2: memref<1x128xf32, #tpu.memory_space<vmem>>, %arg3: memref<128x10xbf16, #tpu.memory_space<vmem>>, %arg4: memref<1x10xf32, #tpu.memory_space<vmem>>, %arg5: memref<2x10xf32, #tpu.memory_space<vmem>>) attributes {dimension_semantics = [], scalar_prefetch = 0 : i64, scratch_operands = 0 : i64, tpu.core_type = #tpu.core_type<tc>} {
    %c0 = arith.constant 0 : index
    %c0_0 = arith.constant 0 : index
    %0 = vector.load %arg0[%c0, %c0_0] : memref<2x256xbf16, #tpu.memory_space<vmem>>, vector<2x256xbf16>
    %c0_1 = arith.constant 0 : index
    %c0_2 = arith.constant 0 : index
    %1 = vector.load %arg1[%c0_1, %c0_2] : memref<256x128xbf16, #tpu.memory_space<vmem>>, vector<256x128xbf16>
    %cst = arith.constant dense<0.000000e+00> : vector<2x128xf32>
    %2 = tpu.matmul %0, %1, %cst {dimension_numbers = #tpu.dot_dimension_numbers<[1], [0], [0], [1], [0, 0, 1, 1], [], []>} : vector<2x256xbf16>, vector<256x128xbf16>, vector<2x128xf32> -> vector<2x128xf32>
    %c0_3 = arith.constant 0 : index
    %c0_4 = arith.constant 0 : index
    %3 = vector.load %arg2[%c0_3, %c0_4] : memref<1x128xf32, #tpu.memory_space<vmem>>, vector<1x128xf32>
    %4 = vector.broadcast %3 : vector<1x128xf32> to vector<2x128xf32>
    %5 = arith.addf %2, %4 : vector<2x128xf32>
    %cst_5 = arith.constant 0.000000e+00 : f32
    %6 = vector.broadcast %cst_5 : f32 to vector<2x128xf32>
    %7 = arith.maximumf %5, %6 : vector<2x128xf32>
    %8 = arith.truncf %7 : vector<2x128xf32> to vector<2x128xbf16>
    %c0_6 = arith.constant 0 : index
    %c0_7 = arith.constant 0 : index
    %9 = vector.load %arg3[%c0_6, %c0_7] : memref<128x10xbf16, #tpu.memory_space<vmem>>, vector<128x10xbf16>
    %cst_8 = arith.constant dense<0.000000e+00> : vector<2x10xf32>
    %10 = tpu.matmul %8, %9, %cst_8 {dimension_numbers = #tpu.dot_dimension_numbers<[1], [0], [0], [1], [0, 0, 1, 1], [], []>} : vector<2x128xbf16>, vector<128x10xbf16>, vector<2x10xf32> -> vector<2x10xf32>
    %c0_9 = arith.constant 0 : index
    %c0_10 = arith.constant 0 : index
    %11 = vector.load %arg4[%c0_9, %c0_10] : memref<1x10xf32, #tpu.memory_space<vmem>>, vector<1x10xf32>
    %12 = vector.broadcast %11 : vector<1x10xf32> to vector<2x10xf32>
    %13 = arith.addf %10, %12 : vector<2x10xf32>
    %c0_11 = arith.constant 0 : index
    %c0_12 = arith.constant 0 : index
    %14 = vector.load %arg5[%c0_11, %c0_12] : memref<2x10xf32, #tpu.memory_space<vmem>>, vector<2x10xf32>
    tpu.vector_store %arg5[%c0_11, %c0_12], %13 {strides = array<i32>} : memref<2x10xf32, #tpu.memory_space<vmem>>, vector<2x10xf32>,
    return
  }
}

</mosaic_0001>

<llo_original>
// kernel: baseline_cnn_forward.3
$region0: #{baseline_cnn_forward.3}
  #allocation0 [shape = 'u32[]', space=smem, size = 0x4, offset = 0x4, fixed_abs, tag = 'smem constant byte address 0x4 - core index']
  #allocation1 [shape = 'u32[144,128]{1,0:T(1,128)}', space=vmem, size = 0x12000, scoped, tag = 'internal scratch']
  %s0 = inlined_call_operand.vmem [shape: bf16[4,128,36], index: 0, kind: input, shape index: {}]
  %s1 = inlined_call_operand.vmem [shape: bf16[36,8], index: 1, kind: input, shape index: {}]
  %s2 = inlined_call_operand.vmem [shape: f32[1,8], index: 2, kind: input, shape index: {}]
  %s3 = inlined_call_operand.vmem [shape: bf16[128,8], index: 3, kind: output, shape index: {}]
  %s4 = sld [smem:[#allocation0]]
  $region86: #{baseline_cnn_forward.3} parent=0
    _
  %s6 = ssub.s32 1, %s4
  %s7 = scalar_select 0, %s6, %s4
  $region1: #{baseline_cnn_forward.3} parent=0
    #allocation2 [shape = 'u8[131072]{0}', space=vmem, size = 0x20000, scoped, tag = 'input window, operand 0']
    loop: start=0, step=1, limit=4
    $region2: #{baseline_cnn_forward.3} parent=1 // loop_pre_header
      _
    $region3: #{baseline_cnn_forward.3} parent=1 // loop_header
      %s9 = sphi 0, %s13
      %p10 = scmp.ge.s32.totalorder %s9, 4
      %s19 = sphi 0, %s21
      %s22 = sphi 0, %s19
      %s23 = sphi 0, %s22
      %s39 = sphi 0, %s23
      %s43 = sphi 0, %s43
      %s45 = sphi 0, %s43
      %s46 = sphi 0, %s45
      %s60 = sphi 0, %s46
      %s64 = sphi 0, %s64
      %s66 = sphi 0, %s64
      %s67 = sphi 0, %s66
      %s81 = sphi 0, %s67
      %s87 = sphi 0, %s89
      %s90 = sphi 0, %s87
      %s91 = sphi 0, %s90
      %s107 = sphi 0, %s91
    $region4: #{baseline_cnn_forward.3} parent=1 // loop_header_branch
      %12 = sbr.rel (%p10) target = $region8
    $region5: #{baseline_cnn_forward.3} parent=1 // loop_body
      %s14 = ssub.s32 %s9, 1
      %s15 = ssub.s32 %s9, 2
      %s16 = sadd.s32 %s9, 1
      %s17 = ssub.s32 %s9, %s16
      %p18 = scmp.eq.s32.totalorder %s17, 0
      %s20 = sadd.s32 %s19, 1
      %s21 = scalar_select %p18, %s19, %s20
      %p24 = pneg %p18
      %p25 = scmp.eq.s32.totalorder %s9, 1
      %p26 = por %p24, %p25
      %p27 = scmp.ne.s32.totalorder %s19, %s22
      %p28 = scmp.eq.s32.totalorder %s9, 0
      %p29 = por %p27, %p28
      %p30 = scmp.ne.s32.totalorder %s19, %s22
      %p31 = scmp.eq.s32.totalorder %s14, 1
      %p32 = por %p30, %p31
      %p33 = scmp.ne.s32.totalorder %s22, %s23
      %p34 = scmp.eq.s32.totalorder %s14, 0
      %p35 = por %p33, %p34
      %p36 = scmp.ne.s32.totalorder %s22, %s23
      %p37 = scmp.eq.s32.totalorder %s15, 1
      %p38 = por %p36, %p37
      %p40 = scmp.ne.s32.totalorder %s23, %s39
      %p41 = scmp.eq.s32.totalorder %s15, 0
      %p42 = por %p40, %p41
      %s44 = sadd.s32 %s43, 1
      %p47 = scmp.eq.s32.totalorder %s9, 1
      %p48 = scmp.ne.s32.totalorder %s43, %s45
      %p49 = scmp.eq.s32.totalorder %s9, 0
      %p50 = por %p48, %p49
      %p51 = scmp.ne.s32.totalorder %s43, %s45
      %p52 = scmp.eq.s32.totalorder %s14, 1
      %p53 = por %p51, %p52
      %p54 = scmp.ne.s32.totalorder %s45, %s46
      %p55 = scmp.eq.s32.totalorder %s14, 0
      %p56 = por %p54, %p55
      %p57 = scmp.ne.s32.totalorder %s45, %s46
      %p58 = scmp.eq.s32.totalorder %s15, 1
      %p59 = por %p57, %p58
      %p61 = scmp.ne.s32.totalorder %s46, %s60
      %p62 = scmp.eq.s32.totalorder %s15, 0
      %p63 = por %p61, %p62
      %s65 = sadd.s32 %s64, 1
      %p68 = scmp.eq.s32.totalorder %s9, 1
      %p69 = scmp.ne.s32.totalorder %s64, %s66
      %p70 = scmp.eq.s32.totalorder %s9, 0
      %p71 = por %p69, %p70
      %p72 = scmp.ne.s32.totalorder %s64, %s66
      %p73 = scmp.eq.s32.totalorder %s14, 1
      %p74 = por %p72, %p73
      %p75 = scmp.ne.s32.totalorder %s66, %s67
      %p76 = scmp.eq.s32.totalorder %s14, 0
      %p77 = por %p75, %p76
      %p78 = scmp.ne.s32.totalorder %s66, %s67
      %p79 = scmp.eq.s32.totalorder %s15, 1
      %p80 = por %p78, %p79
      %p82 = scmp.ne.s32.totalorder %s67, %s81
      %p83 = scmp.eq.s32.totalorder %s15, 0
      %p84 = por %p82, %p83
      %s85 = ssub.s32 %s9, %s16
      %p86 = scmp.eq.s32.totalorder %s85, 0
      %s88 = sadd.s32 %s87, 1
      %s89 = scalar_select %p86, %s87, %s88
      %p92 = pneg %p86
      %p93 = scmp.eq.s32.totalorder %s9, 1
      %p94 = por %p92, %p93
      %p95 = scmp.ne.s32.totalorder %s87, %s90
      %p96 = scmp.eq.s32.totalorder %s9, 0
      %p97 = por %p95, %p96
      %p98 = scmp.ne.s32.totalorder %s87, %s90
      %p99 = scmp.eq.s32.totalorder %s14, 1
      %p100 = por %p98, %p99
      %p101 = scmp.ne.s32.totalorder %s90, %s91
      %p102 = scmp.eq.s32.totalorder %s14, 0
      %p103 = por %p101, %p102
      %p104 = scmp.ne.s32.totalorder %s90, %s91
      %p105 = scmp.eq.s32.totalorder %s15, 1
      %p106 = por %p104, %p105
      %p108 = scmp.ne.s32.totalorder %s91, %s107
      %p109 = scmp.eq.s32.totalorder %s15, 0
      %p110 = por %p108, %p109
      %p111 = scmp.le.s32.totalorder 1, %s9
      %p112 = scmp.lt.s32.totalorder %s9, 3
      %p113 = pnand %p111, %p112
      %p114 = pneg %p113
      // Predicated region
      $region9: #{baseline_cnn_forward.3} parent=5 // pred_check
        _
      $region10: #{baseline_cnn_forward.3} parent=5 // pred_check_branch
        %116 = sbr.rel (%p113) target = $region12
      $region11: #{baseline_cnn_forward.3} parent=5 // pred_region
        %s117 = ssub.s32 %s9, 1
        // Predicated region
        $region13: #{baseline_cnn_forward.3} parent=11 // pred_check
          %p118 = pneg %p56
        $region14: #{baseline_cnn_forward.3} parent=11 // pred_check_branch
          %120 = sbr.rel (%p118) target = $region16
        $region15: #{baseline_cnn_forward.3} parent=11 // pred_region
          _
        $region16: #{baseline_cnn_forward.3} parent=11 // pred_fallthru
          _
        // Predicated region
        $region17: #{baseline_cnn_forward.3} parent=11 // pred_check
          %p121 = pneg %p77
        $region18: #{baseline_cnn_forward.3} parent=11 // pred_check_branch
          %123 = sbr.rel (%p121) target = $region20
        $region19: #{baseline_cnn_forward.3} parent=11 // pred_region
          _
        $region20: #{baseline_cnn_forward.3} parent=11 // pred_fallthru
          _
      $region12: #{baseline_cnn_forward.3} parent=5 // pred_fallthru
        _
      %p124 = scmp.lt.s32.totalorder %s9, 2
      // Predicated region
      $region21: #{baseline_cnn_forward.3} parent=5 // pred_check
        %p125 = pneg %p124
      $region22: #{baseline_cnn_forward.3} parent=5 // pred_check_branch
        %127 = sbr.rel (%p125) target = $region24
      $region23: #{baseline_cnn_forward.3} parent=5 // pred_region
        // Predicated region
        $region25: #{baseline_cnn_forward.3} parent=23 // pred_check
          %p128 = pneg %p29
        $region26: #{baseline_cnn_forward.3} parent=23 // pred_check_branch
          %130 = sbr.rel (%p128) target = $region28
        $region27: #{baseline_cnn_forward.3} parent=23 // pred_region
          %s131 = sand.u32 %s19, 1
          %s132 = sand.u32 %s19, 1
          %s133 = smul.addr %s132, 128
          %s134 = scalar_lea.vmem [#allocation2], %s133
          %s135 = smul.u32 8, %s9
          %s136 = smul.addr %s135, 4
          %s137 = scalar_lea.vmem %s0, %s136
          // Predicated region
          $region29: #{baseline_cnn_forward.3} parent=27 // pred_check
            _
          $region30: #{baseline_cnn_forward.3} parent=27 // pred_check_branch
            %139 = sbr.rel (0) target = $region32
          $region31: #{baseline_cnn_forward.3} parent=27 // pred_region
            // Predicated region
            $region33: #{baseline_cnn_forward.3} parent=31 // pred_check
              _
            $region34: #{baseline_cnn_forward.3} parent=31 // pred_check_branch
              %141 = sbr.rel target = $region36
            $region35: #{baseline_cnn_forward.3} parent=31 // pred_region
              // Predicated region
              $region48: #{baseline_cnn_forward.3} parent=35 // pred_check
                _
              $region49: #{baseline_cnn_forward.3} parent=35 // pred_check_branch
                %218 = sbr.rel (0) target = $region51
              $region50: #{baseline_cnn_forward.3} parent=35 // pred_region
                loop: start=0, step=1, limit=1
                $region52: #{baseline_cnn_forward.3} parent=50 // loop_pre_header
                  _
                $region53: #{baseline_cnn_forward.3} parent=50 // loop_header
                  %s220 = sphi 0, %s224
                  %p221 = scmp.ge.s32.totalorder %s220, 1
                  %s225 = sphi %s137, %s137
                  %s226 = sphi %s134, %s134
                $region54: #{baseline_cnn_forward.3} parent=50 // loop_header_branch
                  %223 = sbr.rel (%p221) target = $region58
                $region55: #{baseline_cnn_forward.3} parent=50 // loop_body
                  _
                $region56: #{baseline_cnn_forward.3} parent=50 // loop_footer
                  %s224 = sadd.s32 1, %s220
                $region57: #{baseline_cnn_forward.3} parent=50 // loop_footer_branch
                  %219 = sbr.rel target = $region53
                $region58: #{baseline_cnn_forward.3} parent=50 // loop_exit
                  _
                loop: start=0, step=1, limit=1
                $region59: #{baseline_cnn_forward.3} parent=50 // loop_pre_header
                  _
                $region60: #{baseline_cnn_forward.3} parent=50 // loop_header
                  %s229 = sphi 0, %s233
                  %p230 = scmp.ge.s32.totalorder %s229, 1
                  %s234 = sphi %s137, %s137
                  %s235 = sphi %s134, %s134
                $region61: #{baseline_cnn_forward.3} parent=50 // loop_header_branch
                  %232 = sbr.rel (%p230) target = $region65
                $region62: #{baseline_cnn_forward.3} parent=50 // loop_body
                  %v236 = vld [vmem:[%s234] sm:$0xf]
                  %237 = vst [vmem:[%s235] sm:$0xf] %v236
                  %v238 = vld [vmem:[%s234 + $0x4] sm:$0xf]
                  %239 = vst [vmem:[%s235 + $0x4] sm:$0xf] %v238
                  %v240 = vld [vmem:[%s234 + $0x8] sm:$0xf]
                  %241 = vst [vmem:[%s235 + $0x8] sm:$0xf] %v240
                  %v242 = vld [vmem:[%s234 + $0xc] sm:$0xf]
                  %243 = vst [vmem:[%s235 + $0xc] sm:$0xf] %v242
                  %v244 = vld [vmem:[%s234 + $0x10] sm:$0xf]
                  %245 = vst [vmem:[%s235 + $0x10] sm:$0xf] %v244
                  %v246 = vld [vmem:[%s234 + $0x14] sm:$0xf]
                  %247 = vst [vmem:[%s235 + $0x14] sm:$0xf] %v246
                  %v248 = vld [vmem:[%s234 + $0x18] sm:$0xf]
                  %249 = vst [vmem:[%s235 + $0x18] sm:$0xf] %v248
                  %v250 = vld [vmem:[%s234 + $0x1c] sm:$0xf]
                  %251 = vst [vmem:[%s235 + $0x1c] sm:$0xf] %v250
                  %v252 = vld [vmem:[%s234 + $0x40] sm:$0xf]
                  %253 = vst [vmem:[%s235 + $0x20] sm:$0xf] %v252
                  %v254 = vld [vmem:[%s234 + $0x44] sm:$0xf]
                  %255 = vst [vmem:[%s235 + $0x24] sm:$0xf] %v254
                  %v256 = vld [vmem:[%s234 + $0x48] sm:$0xf]
                  %257 = vst [vmem:[%s235 + $0x28] sm:$0xf] %v256
                  %v258 = vld [vmem:[%s234 + $0x4c] sm:$0xf]
                  %259 = vst [vmem:[%s235 + $0x2c] sm:$0xf] %v258
                  %v260 = vld [vmem:[%s234 + $0x50] sm:$0xf]
                  %261 = vst [vmem:[%s235 + $0x30] sm:$0xf] %v260
                  %v262 = vld [vmem:[%s234 + $0x54] sm:$0xf]
                  %263 = vst [vmem:[%s235 + $0x34] sm:$0xf] %v262
                  %v264 = vld [vmem:[%s234 + $0x58] sm:$0xf]
                  %265 = vst [vmem:[%s235 + $0x38] sm:$0xf] %v264
                  %v266 = vld [vmem:[%s234 + $0x5c] sm:$0xf]
                  %267 = vst [vmem:[%s235 + $0x3c] sm:$0xf] %v266
                  %v268 = vld [vmem:[%s234 + $0x80] sm:$0xf]
                  %269 = vst [vmem:[%s235 + $0x40] sm:$0xf] %v268
                  %v270 = vld [vmem:[%s234 + $0x84] sm:$0xf]
                  %271 = vst [vmem:[%s235 + $0x44] sm:$0xf] %v270
                  %v272 = vld [vmem:[%s234 + $0x88] sm:$0xf]
                  %273 = vst [vmem:[%s235 + $0x48] sm:$0xf] %v272
                  %v274 = vld [vmem:[%s234 + $0x8c] sm:$0xf]
                  %275 = vst [vmem:[%s235 + $0x4c] sm:$0xf] %v274
                  %v276 = vld [vmem:[%s234 + $0x90] sm:$0xf]
                  %277 = vst [vmem:[%s235 + $0x50] sm:$0xf] %v276
                  %v278 = vld [vmem:[%s234 + $0x94] sm:$0xf]
                  %279 = vst [vmem:[%s235 + $0x54] sm:$0xf] %v278
                  %v280 = vld [vmem:[%s234 + $0x98] sm:$0xf]
                  %281 = vst [vmem:[%s235 + $0x58] sm:$0xf] %v280
                  %v282 = vld [vmem:[%s234 + $0x9c] sm:$0xf]
                  %283 = vst [vmem:[%s235 + $0x5c] sm:$0xf] %v282
                  %v284 = vld [vmem:[%s234 + $0xc0] sm:$0xf]
                  %285 = vst [vmem:[%s235 + $0x60] sm:$0xf] %v284
                  %v286 = vld [vmem:[%s234 + $0xc4] sm:$0xf]
                  %287 = vst [vmem:[%s235 + $0x64] sm:$0xf] %v286
                  %v288 = vld [vmem:[%s234 + $0xc8] sm:$0xf]
                  %289 = vst [vmem:[%s235 + $0x68] sm:$0xf] %v288
                  %v290 = vld [vmem:[%s234 + $0xcc] sm:$0xf]
                  %291 = vst [vmem:[%s235 + $0x6c] sm:$0xf] %v290
                  %v292 = vld [vmem:[%s234 + $0xd0] sm:$0xf]
                  %293 = vst [vmem:[%s235 + $0x70] sm:$0xf] %v292
                  %v294 = vld [vmem:[%s234 + $0xd4] sm:$0xf]
                  %295 = vst [vmem:[%s235 + $0x74] sm:$0xf] %v294
                  %v296 = vld [vmem:[%s234 + $0xd8] sm:$0xf]
                  %297 = vst [vmem:[%s235 + $0x78] sm:$0xf] %v296
                  %v298 = vld [vmem:[%s234 + $0xdc] sm:$0xf]
                  %299 = vst [vmem:[%s235 + $0x7c] sm:$0xf] %v298
                $region63: #{baseline_cnn_forward.3} parent=50 // loop_footer
                  %s233 = sadd.s32 1, %s229
                $region64: #{baseline_cnn_forward.3} parent=50 // loop_footer_branch
                  %228 = sbr.rel target = $region60
                $region65: #{baseline_cnn_forward.3} parent=50 // loop_exit
                  _
              $region51: #{baseline_cnn_forward.3} parent=35 // pred_fallthru
                _
            $region36: #{baseline_cnn_forward.3} parent=31 // pred_fallthru
              _
            // Predicated region
            $region37: #{baseline_cnn_forward.3} parent=31 // pred_check
              _
            $region38: #{baseline_cnn_forward.3} parent=31 // pred_check_branch
              %143 = sbr.rel (0) target = $region40
            $region39: #{baseline_cnn_forward.3} parent=31 // pred_region
              loop: start=0, step=1, limit=1
              $region41: #{baseline_cnn_forward.3} parent=39 // loop_pre_header
                _
              $region42: #{baseline_cnn_forward.3} parent=39 // loop_header
                %s146 = sphi 0, %s150
                %p147 = scmp.ge.s32.totalorder %s146, 1
                %s151 = sphi %s137, %s137
                %s152 = sphi %s134, %s134
              $region43: #{baseline_cnn_forward.3} parent=39 // loop_header_branch
                %149 = sbr.rel (%p147) target = $region47
              $region44: #{baseline_cnn_forward.3} parent=39 // loop_body
                %v153 = vld [vmem:[%s151] sm:$0xf]
                %154 = vst [vmem:[%s152] sm:$0xf] %v153
                %v155 = vld [vmem:[%s151 + $0x4] sm:$0xf]
                %156 = vst [vmem:[%s152 + $0x4] sm:$0xf] %v155
                %v157 = vld [vmem:[%s151 + $0x8] sm:$0xf]
                %158 = vst [vmem:[%s152 + $0x8] sm:$0xf] %v157
                %v159 = vld [vmem:[%s151 + $0xc] sm:$0xf]
                %160 = vst [vmem:[%s152 + $0xc] sm:$0xf] %v159
                %v161 = vld [vmem:[%s151 + $0x10] sm:$0xf]
                %162 = vst [vmem:[%s152 + $0x10] sm:$0xf] %v161
                %v163 = vld [vmem:[%s151 + $0x14] sm:$0xf]
                %164 = vst [vmem:[%s152 + $0x14] sm:$0xf] %v163
                %v165 = vld [vmem:[%s151 + $0x18] sm:$0xf]
                %166 = vst [vmem:[%s152 + $0x18] sm:$0xf] %v165
                %v167 = vld [vmem:[%s151 + $0x1c] sm:$0xf]
                %168 = vst [vmem:[%s152 + $0x1c] sm:$0xf] %v167
                %v169 = vld [vmem:[%s151 + $0x40] sm:$0xf]
                %170 = vst [vmem:[%s152 + $0x20] sm:$0xf] %v169
                %v171 = vld [vmem:[%s151 + $0x44] sm:$0xf]
                %172 = vst [vmem:[%s152 + $0x24] sm:$0xf] %v171
                %v173 = vld [vmem:[%s151 + $0x48] sm:$0xf]
                %174 = vst [vmem:[%s152 + $0x28] sm:$0xf] %v173
                %v175 = vld [vmem:[%s151 + $0x4c] sm:$0xf]
                %176 = vst [vmem:[%s152 + $0x2c] sm:$0xf] %v175
                %v177 = vld [vmem:[%s151 + $0x50] sm:$0xf]
                %178 = vst [vmem:[%s152 + $0x30] sm:$0xf] %v177
                %v179 = vld [vmem:[%s151 + $0x54] sm:$0xf]
                %180 = vst [vmem:[%s152 + $0x34] sm:$0xf] %v179
                %v181 = vld [vmem:[%s151 + $0x58] sm:$0xf]
                %182 = vst [vmem:[%s152 + $0x38] sm:$0xf] %v181
                %v183 = vld [vmem:[%s151 + $0x5c] sm:$0xf]
                %184 = vst [vmem:[%s152 + $0x3c] sm:$0xf] %v183
                %v185 = vld [vmem:[%s151 + $0x80] sm:$0xf]
                %186 = vst [vmem:[%s152 + $0x40] sm:$0xf] %v185
                %v187 = vld [vmem:[%s151 + $0x84] sm:$0xf]
                %188 = vst [vmem:[%s152 + $0x44] sm:$0xf] %v187
                %v189 = vld [vmem:[%s151 + $0x88] sm:$0xf]
                %190 = vst [vmem:[%s152 + $0x48] sm:$0xf] %v189
                %v191 = vld [vmem:[%s151 + $0x8c] sm:$0xf]
                %192 = vst [vmem:[%s152 + $0x4c] sm:$0xf] %v191
                %v193 = vld [vmem:[%s151 + $0x90] sm:$0xf]
                %194 = vst [vmem:[%s152 + $0x50] sm:$0xf] %v193
                %v195 = vld [vmem:[%s151 + $0x94] sm:$0xf]
                %196 = vst [vmem:[%s152 + $0x54] sm:$0xf] %v195
                %v197 = vld [vmem:[%s151 + $0x98] sm:$0xf]
                %198 = vst [vmem:[%s152 + $0x58] sm:$0xf] %v197
                %v199 = vld [vmem:[%s151 + $0x9c] sm:$0xf]
                %200 = vst [vmem:[%s152 + $0x5c] sm:$0xf] %v199
                %v201 = vld [vmem:[%s151 + $0xc0] sm:$0xf]
                %202 = vst [vmem:[%s152 + $0x60] sm:$0xf] %v201
                %v203 = vld [vmem:[%s151 + $0xc4] sm:$0xf]
                %204 = vst [vmem:[%s152 + $0x64] sm:$0xf] %v203
                %v205 = vld [vmem:[%s151 + $0xc8] sm:$0xf]
                %206 = vst [vmem:[%s152 + $0x68] sm:$0xf] %v205
                %v207 = vld [vmem:[%s151 + $0xcc] sm:$0xf]
                %208 = vst [vmem:[%s152 + $0x6c] sm:$0xf] %v207
                %v209 = vld [vmem:[%s151 + $0xd0] sm:$0xf]
                %210 = vst [vmem:[%s152 + $0x70] sm:$0xf] %v209
                %v211 = vld [vmem:[%s151 + $0xd4] sm:$0xf]
                %212 = vst [vmem:[%s152 + $0x74] sm:$0xf] %v211
                %v213 = vld [vmem:[%s151 + $0xd8] sm:$0xf]
                %214 = vst [vmem:[%s152 + $0x78] sm:$0xf] %v213
                %v215 = vld [vmem:[%s151 + $0xdc] sm:$0xf]
                %216 = vst [vmem:[%s152 + $0x7c] sm:$0xf] %v215
              $region45: #{baseline_cnn_forward.3} parent=39 // loop_footer
                %s150 = sadd.s32 1, %s146
              $region46: #{baseline_cnn_forward.3} parent=39 // loop_footer_branch
                %145 = sbr.rel target = $region42
              $region47: #{baseline_cnn_forward.3} parent=39 // loop_exit
                _
            $region40: #{baseline_cnn_forward.3} parent=31 // pred_fallthru
              _
          $region32: #{baseline_cnn_forward.3} parent=27 // pred_fallthru
            _
          %300 = vnop
        $region28: #{baseline_cnn_forward.3} parent=23 // pred_fallthru
          _
      $region24: #{baseline_cnn_forward.3} parent=5 // pred_fallthru
        _
      %p301 = scmp.le.s32.totalorder 1, %s9
      %p302 = scmp.lt.s32.totalorder %s9, 3
      %p303 = pnand %p301, %p302
      %p304 = pneg %p303
      // Predicated region
      $region66: #{baseline_cnn_forward.3} parent=5 // pred_check
        _
      $region67: #{baseline_cnn_forward.3} parent=5 // pred_check_branch
        %306 = sbr.rel (%p303) target = $region69
      $region68: #{baseline_cnn_forward.3} parent=5 // pred_region
        %s307 = ssub.s32 %s9, 1
        %s308 = sand.u32 %s22, 1
        %s309 = sand.u32 %s22, 1
        %s310 = smul.addr %s309, 128
        %s311 = scalar_lea.vmem [#allocation2], %s310
        // Predicated region
        $region70: #{baseline_cnn_forward.3} parent=68 // pred_check
          %p312 = pneg %p35
        $region71: #{baseline_cnn_forward.3} parent=68 // pred_check_branch
          %314 = sbr.rel (%p312) target = $region73
        $region72: #{baseline_cnn_forward.3} parent=68 // pred_region
          _
        $region73: #{baseline_cnn_forward.3} parent=68 // pred_fallthru
          _
        %s315 = sand.u32 %s22, 1
        %s316 = sand.u32 %s22, 1
        %s317 = smul.addr %s316, 128
        %s318 = scalar_lea.vmem [#allocation2], %s317
        %p319 = pneg %p35
        %p320 = pneg %p32
        %p321 = pneg %p56
        %p322 = pneg %p53
        %p323 = pneg %p77
        %p324 = pneg %p74
        %p325 = pneg %p103
        %p326 = pneg %p100
        %s327 = smul.u32 8, %s14
        %p328 = scmp.lt.s32.totalorder %s327, 15
        %s329 = scalar_select %p328, %s327, 15
        %s330 = smul.addr %s329, 4
        %s331 = scalar_lea.vmem %s3, %s330
        %s332 = smul.u32 8, %s14
        %s333 = smul.u32 8, %s14
        %p334 = scmp.lt.s32.totalorder %s333, 15
        %s335 = scalar_select %p334, %s333, 15
        %s336 = smul.addr %s335, 4
        %s337 = scalar_lea.vmem %s3, %s336
        %s338 = smul.u32 8, %s14
        %v340 = vld [vmem:[%s1] sm:$0xf]
        %v341 = vld [vmem:[%s1 + $0x4] sm:$0xf]
        %v342 = vld [vmem:[%s1 + $0x8] sm:$0xf]
        %v343 = vld [vmem:[%s1 + $0xc] sm:$0xf]
        %v344 = vld [vmem:[%s1 + $0x10] sm:$0x3]
        %v345 = vld [vmem:[%s311] sm:$0xf]
        %v346 = vld [vmem:[%s311 + $0x4] sm:$0xf]
        %v347 = vld [vmem:[%s311 + $0x8] sm:$0xf]
        %v348 = vld [vmem:[%s311 + $0xc] sm:$0xf]
        %v349 = vld [vmem:[%s311 + $0x10] sm:$0xf]
        %v350 = vld [vmem:[%s311 + $0x14] sm:$0xf]
        %v351 = vld [vmem:[%s311 + $0x18] sm:$0xf]
        %v352 = vld [vmem:[%s311 + $0x1c] sm:$0xf]
        %v361 = vunpack.c.l.b16 %v345
        %v362 = vunpack.c.l.b16 %v346
        %v363 = vunpack.c.l.b16 %v347
        %v364 = vunpack.c.l.b16 %v348
        %v365 = vunpack.c.l.b16 %v349
        %v366 = vunpack.c.l.b16 %v350
        %v367 = vunpack.c.l.b16 %v351
        %v368 = vunpack.c.l.b16 %v352
        %v369 = vpack.c.b16 %v362, %v361
        %v370 = vpack.c.b16 %v364, %v363
        %v371 = vpack.c.b16 %v366, %v365
        %v372 = vpack.c.b16 %v368, %v367
        %v378 = vunpack.c.l.b16 %v340
        %v379 = vunpack.c.l.b16 %v341
        %v380 = vunpack.c.l.b16 %v342
        %v381 = vunpack.c.l.b16 %v343
        %v382 = vunpack.c.l.b16 %v344
        %v383 = vpack.c.b16 %v379, %v378
        %v384 = vpack.c.b16 %v381, %v380
        %v385 = vpack.c.b16 %v382, %v382
        %vm388 = vcmask 293888
        %v390 = vsel %vm388, %v369, 0
        %v393 = vsel %vm388, %v370, 0
        %v396 = vsel %vm388, %v371, 0
        %v399 = vsel %vm388, %v372, 0
        %vm401 = vcmask 1041408
        %v403 = vsel %vm401, %v385, 0
        %405 = vmatprep.subr.bf16.mxu0 0
        %406 = vmatpush1.bf16.msra.mxu0 %v383
        %407 = vmatprep.subr.bf16.mxu0 0
        %408 = vmatpush1.bf16.msra.mxu0 %v384
        %409 = vmatprep.subr.bf16.mxu0 0
        %410 = vmatpush1.bf16.msra.mxu0 %v403
        %411 = vmatprep.subr.bf16.mxu0 0
        %412 = vmatpush1.bf16.msra.mxu0 0
        %413 = vmatprep.subr.bf16.mxu0 0
        %414 = vmatpush1.bf16.msra.mxu0 0
        %415 = vmatprep.subr.bf16.mxu0 0
        %416 = vmatpush1.bf16.msra.mxu0 0
        %417 = vmatprep.subr.bf16.mxu0 0
        %418 = vmatpush1.bf16.msra.mxu0 0
        %419 = vmatprep.subr.bf16.mxu0 0
        %420 = vmatpush1.bf16.msra.mxu0 0
        %421 = vmatprep.subr.bf16.mxu0 0
        %422 = vmatpush1.bf16.msra.mxu0 0
        %423 = vmatprep.subr.bf16.mxu0 0
        %424 = vmatpush1.bf16.msra.mxu0 0
        %425 = vmatprep.subr.bf16.mxu0 0
        %426 = vmatpush1.bf16.msra.mxu0 0
        %427 = vmatprep.subr.bf16.mxu0 0
        %428 = vmatpush1.bf16.msra.mxu0 0
        %429 = vmatprep.subr.bf16.mxu0 0
        %430 = vmatpush1.bf16.msra.mxu0 0
        %431 = vmatprep.subr.bf16.mxu0 0
        %432 = vmatpush1.bf16.msra.mxu0 0
        %433 = vmatprep.subr.bf16.mxu0 0
        %434 = vmatpush1.bf16.msra.mxu0 0
        %435 = vmatprep.subr.bf16.mxu0 0
        %436 = vmatpush1.bf16.msra.mxu0 0
        %437 = vmatprep.mubr.bf16.mxu0 0
        %438 = vmatmul.mubr.bf16.gmra.mrb[0].mxu0 %v390
        %v439 = vpop.f32.mrb[0].mxu0
        %v440 = vadd.f32 0.0, %v439
        %v441 = vpop.f32.mrb[0].mxu0
        %v442 = vpop.f32.mrb[0].mxu0
        %v443 = vadd.f32 0.0, %v442
        %v444 = vpop.f32.mrb[0].mxu0
        %445 = vmatprep.mubr.bf16.mxu0 0
        %446 = vmatmul.mubr.bf16.gmra.mrb[0].mxu0 %v393
        %v447 = vpop.f32.mrb[0].mxu0
        %v448 = vadd.f32 0.0, %v447
        %v449 = vpop.f32.mrb[0].mxu0
        %v450 = vpop.f32.mrb[0].mxu0
        %v451 = vadd.f32 0.0, %v450
        %v452 = vpop.f32.mrb[0].mxu0
        %453 = vmatprep.mubr.bf16.mxu0 0
        %454 = vmatmul.mubr.bf16.gmra.mrb[0].mxu0 %v396
        %v455 = vpop.f32.mrb[0].mxu0
        %v456 = vadd.f32 0.0, %v455
        %v457 = vpop.f32.mrb[0].mxu0
        %v458 = vpop.f32.mrb[0].mxu0
        %v459 = vadd.f32 0.0, %v458
        %v460 = vpop.f32.mrb[0].mxu0
        %461 = vmatprep.mubr.bf16.mxu0 0
        %462 = vmatmul.mubr.bf16.gmra.mrb[0].mxu0 %v399
        %v463 = vpop.f32.mrb[0].mxu0
        %v464 = vadd.f32 0.0, %v463
        %v465 = vpop.f32.mrb[0].mxu0
        %v466 = vpop.f32.mrb[0].mxu0
        %v467 = vadd.f32 0.0, %v466
        %v468 = vpop.f32.mrb[0].mxu0
        %469 = vdwg.mxu0
        %s470 = scalar_lea.vmem %s311, 32 [#allocation2]
        %v471 = vld [vmem:[%s470] sm:$0xf]
        %v472 = vld [vmem:[%s470 + $0x4] sm:$0xf]
        %v473 = vld [vmem:[%s470 + $0x8] sm:$0xf]
        %v474 = vld [vmem:[%s470 + $0xc] sm:$0xf]
        %v475 = vld [vmem:[%s470 + $0x10] sm:$0xf]
        %v476 = vld [vmem:[%s470 + $0x14] sm:$0xf]
        %v477 = vld [vmem:[%s470 + $0x18] sm:$0xf]
        %v478 = vld [vmem:[%s470 + $0x1c] sm:$0xf]
        %v487 = vunpack.c.l.b16 %v471
        %v488 = vunpack.c.l.b16 %v472
        %v489 = vunpack.c.l.b16 %v473
        %v490 = vunpack.c.l.b16 %v474
        %v491 = vunpack.c.l.b16 %v475
        %v492 = vunpack.c.l.b16 %v476
        %v493 = vunpack.c.l.b16 %v477
        %v494 = vunpack.c.l.b16 %v478
        %v495 = vpack.c.b16 %v488, %v487
        %v496 = vpack.c.b16 %v490, %v489
        %v497 = vpack.c.b16 %v492, %v491
        %v498 = vpack.c.b16 %v494, %v493
        %v500 = vsel %vm388, %v495, 0
        %v503 = vsel %vm388, %v496, 0
        %v506 = vsel %vm388, %v497, 0
        %v509 = vsel %vm388, %v498, 0
        %511 = vmatprep.subr.bf16.mxu0 0
        %512 = vmatpush1.bf16.msra.mxu0 %v383
        %513 = vmatprep.subr.bf16.mxu0 0
        %514 = vmatpush1.bf16.msra.mxu0 %v384
        %515 = vmatprep.subr.bf16.mxu0 0
        %516 = vmatpush1.bf16.msra.mxu0 %v403
        %517 = vmatprep.subr.bf16.mxu0 0
        %518 = vmatpush1.bf16.msra.mxu0 0
        %519 = vmatprep.subr.bf16.mxu0 0
        %520 = vmatpush1.bf16.msra.mxu0 0
        %521 = vmatprep.subr.bf16.mxu0 0
        %522 = vmatpush1.bf16.msra.mxu0 0
        %523 = vmatprep.subr.bf16.mxu0 0
        %524 = vmatpush1.bf16.msra.mxu0 0
        %525 = vmatprep.subr.bf16.mxu0 0
        %526 = vmatpush1.bf16.msra.mxu0 0
        %527 = vmatprep.subr.bf16.mxu0 0
        %528 = vmatpush1.bf16.msra.mxu0 0
        %529 = vmatprep.subr.bf16.mxu0 0
        %530 = vmatpush1.bf16.msra.mxu0 0
        %531 = vmatprep.subr.bf16.mxu0 0
        %532 = vmatpush1.bf16.msra.mxu0 0
        %533 = vmatprep.subr.bf16.mxu0 0
        %534 = vmatpush1.bf16.msra.mxu0 0
        %535 = vmatprep.subr.bf16.mxu0 0
        %536 = vmatpush1.bf16.msra.mxu0 0
        %537 = vmatprep.subr.bf16.mxu0 0
        %538 = vmatpush1.bf16.msra.mxu0 0
        %539 = vmatprep.subr.bf16.mxu0 0
        %540 = vmatpush1.bf16.msra.mxu0 0
        %541 = vmatprep.subr.bf16.mxu0 0
        %542 = vmatpush1.bf16.msra.mxu0 0
        %543 = vmatprep.mubr.bf16.mxu0 0
        %544 = vmatmul.mubr.bf16.gmra.mrb[0].mxu0 %v500
        %v545 = vpop.f32.mrb[0].mxu0
        %v546 = vadd.f32 0.0, %v545
        %v547 = vpop.f32.mrb[0].mxu0
        %v548 = vpop.f32.mrb[0].mxu0
        %v549 = vadd.f32 0.0, %v548
        %v550 = vpop.f32.mrb[0].mxu0
        %551 = vmatprep.mubr.bf16.mxu0 0
        %552 = vmatmul.mubr.bf16.gmra.mrb[0].mxu0 %v503
        %v553 = vpop.f32.mrb[0].mxu0
        %v554 = vadd.f32 0.0, %v553
        %v555 = vpop.f32.mrb[0].mxu0
        %v556 = vpop.f32.mrb[0].mxu0
        %v557 = vadd.f32 0.0, %v556
        %v558 = vpop.f32.mrb[0].mxu0
        %559 = vmatprep.mubr.bf16.mxu0 0
        %560 = vmatmul.mubr.bf16.gmra.mrb[0].mxu0 %v506
        %v561 = vpop.f32.mrb[0].mxu0
        %v562 = vadd.f32 0.0, %v561
        %v563 = vpop.f32.mrb[0].mxu0
        %v564 = vpop.f32.mrb[0].mxu0
        %v565 = vadd.f32 0.0, %v564
        %v566 = vpop.f32.mrb[0].mxu0
        %567 = vmatprep.mubr.bf16.mxu0 0
        %568 = vmatmul.mubr.bf16.gmra.mrb[0].mxu0 %v509
        %v569 = vpop.f32.mrb[0].mxu0
        %v570 = vadd.f32 0.0, %v569
        %v571 = vpop.f32.mrb[0].mxu0
        %v572 = vpop.f32.mrb[0].mxu0
        %v573 = vadd.f32 0.0, %v572
        %v574 = vpop.f32.mrb[0].mxu0
        %575 = vdwg.mxu0
        %v576 = vmax.f32 %v440, %v546
        %v577 = vmax.f32 %v443, %v549
        %v578 = vmax.f32 %v448, %v554
        %v579 = vmax.f32 %v451, %v557
        %v580 = vmax.f32 %v456, %v562
        %v581 = vmax.f32 %v459, %v565
        %v582 = vmax.f32 %v464, %v570
        %v583 = vmax.f32 %v467, %v573
        %s584 = scalar_lea.vmem %s311, 64 [#allocation2]
        %v585 = vld [vmem:[%s584] sm:$0xf]
        %v586 = vld [vmem:[%s584 + $0x4] sm:$0xf]
        %v587 = vld [vmem:[%s584 + $0x8] sm:$0xf]
        %v588 = vld [vmem:[%s584 + $0xc] sm:$0xf]
        %v589 = vld [vmem:[%s584 + $0x10] sm:$0xf]
        %v590 = vld [vmem:[%s584 + $0x14] sm:$0xf]
        %v591 = vld [vmem:[%s584 + $0x18] sm:$0xf]
        %v592 = vld [vmem:[%s584 + $0x1c] sm:$0xf]
        %v601 = vunpack.c.l.b16 %v585
        %v602 = vunpack.c.l.b16 %v586
        %v603 = vunpack.c.l.b16 %v587
        %v604 = vunpack.c.l.b16 %v588
        %v605 = vunpack.c.l.b16 %v589
        %v606 = vunpack.c.l.b16 %v590
        %v607 = vunpack.c.l.b16 %v591
        %v608 = vunpack.c.l.b16 %v592
        %v609 = vpack.c.b16 %v602, %v601
        %v610 = vpack.c.b16 %v604, %v603
        %v611 = vpack.c.b16 %v606, %v605
        %v612 = vpack.c.b16 %v608, %v607
        %v614 = vsel %vm388, %v609, 0
        %v617 = vsel %vm388, %v610, 0
        %v620 = vsel %vm388, %v611, 0
        %v623 = vsel %vm388, %v612, 0
        %625 = vmatprep.subr.bf16.mxu0 0
        %626 = vmatpush1.bf16.msra.mxu0 %v383
        %627 = vmatprep.subr.bf16.mxu0 0
        %628 = vmatpush1.bf16.msra.mxu0 %v384
        %629 = vmatprep.subr.bf16.mxu0 0
        %630 = vmatpush1.bf16.msra.mxu0 %v403
        %631 = vmatprep.subr.bf16.mxu0 0
        %632 = vmatpush1.bf16.msra.mxu0 0
        %633 = vmatprep.subr.bf16.mxu0 0
        %634 = vmatpush1.bf16.msra.mxu0 0
        %635 = vmatprep.subr.bf16.mxu0 0
        %636 = vmatpush1.bf16.msra.mxu0 0
        %637 = vmatprep.subr.bf16.mxu0 0
        %638 = vmatpush1.bf16.msra.mxu0 0
        %639 = vmatprep.subr.bf16.mxu0 0
        %640 = vmatpush1.bf16.msra.mxu0 0
        %641 = vmatprep.subr.bf16.mxu0 0
        %642 = vmatpush1.bf16.msra.mxu0 0
        %643 = vmatprep.subr.bf16.mxu0 0
        %644 = vmatpush1.bf16.msra.mxu0 0
        %645 = vmatprep.subr.bf16.mxu0 0
        %646 = vmatpush1.bf16.msra.mxu0 0
        %647 = vmatprep.subr.bf16.mxu0 0
        %648 = vmatpush1.bf16.msra.mxu0 0
        %649 = vmatprep.subr.bf16.mxu0 0
        %650 = vmatpush1.bf16.msra.mxu0 0
        %651 = vmatprep.subr.bf16.mxu0 0
        %652 = vmatpush1.bf16.msra.mxu0 0
        %653 = vmatprep.subr.bf16.mxu0 0
        %654 = vmatpush1.bf16.msra.mxu0 0
        %655 = vmatprep.subr.bf16.mxu0 0
        %656 = vmatpush1.bf16.msra.mxu0 0
        %657 = vmatprep.mubr.bf16.mxu0 0
        %658 = vmatmul.mubr.bf16.gmra.mrb[0].mxu0 %v614
        %v659 = vpop.f32.mrb[0].mxu0
        %v660 = vadd.f32 0.0, %v659
        %v661 = vpop.f32.mrb[0].mxu0
        %v662 = vpop.f32.mrb[0].mxu0
        %v663 = vadd.f32 0.0, %v662
        %v664 = vpop.f32.mrb[0].mxu0
        %665 = vmatprep.mubr.bf16.mxu0 0
        %666 = vmatmul.mubr.bf16.gmra.mrb[0].mxu0 %v617
        %v667 = vpop.f32.mrb[0].mxu0
        %v668 = vadd.f32 0.0, %v667
        %v669 = vpop.f32.mrb[0].mxu0
        %v670 = vpop.f32.mrb[0].mxu0
        %v671 = vadd.f32 0.0, %v670
        %v672 = vpop.f32.mrb[0].mxu0
        %673 = vmatprep.mubr.bf16.mxu0 0
        %674 = vmatmul.mubr.bf16.gmra.mrb[0].mxu0 %v620
        %v675 = vpop.f32.mrb[0].mxu0
        %v676 = vadd.f32 0.0, %v675
        %v677 = vpop.f32.mrb[0].mxu0
        %v678 = vpop.f32.mrb[0].mxu0
        %v679 = vadd.f32 0.0, %v678
        %v680 = vpop.f32.mrb[0].mxu0
        %681 = vmatprep.mubr.bf16.mxu0 0
        %682 = vmatmul.mubr.bf16.gmra.mrb[0].mxu0 %v623
        %v683 = vpop.f32.mrb[0].mxu0
        %v684 = vadd.f32 0.0, %v683
        %v685 = vpop.f32.mrb[0].mxu0
        %v686 = vpop.f32.mrb[0].mxu0
        %v687 = vadd.f32 0.0, %v686
        %v688 = vpop.f32.mrb[0].mxu0
        %689 = vdwg.mxu0
        %s690 = scalar_lea.vmem %s311, 96 [#allocation2]
        %v691 = vld [vmem:[%s690] sm:$0xf]
        %v692 = vld [vmem:[%s690 + $0x4] sm:$0xf]
        %v693 = vld [vmem:[%s690 + $0x8] sm:$0xf]
        %v694 = vld [vmem:[%s690 + $0xc] sm:$0xf]
        %v695 = vld [vmem:[%s690 + $0x10] sm:$0xf]
        %v696 = vld [vmem:[%s690 + $0x14] sm:$0xf]
        %v697 = vld [vmem:[%s690 + $0x18] sm:$0xf]
        %v698 = vld [vmem:[%s690 + $0x1c] sm:$0xf]
        %v707 = vunpack.c.l.b16 %v691
        %v708 = vunpack.c.l.b16 %v692
        %v709 = vunpack.c.l.b16 %v693
        %v710 = vunpack.c.l.b16 %v694
        %v711 = vunpack.c.l.b16 %v695
        %v712 = vunpack.c.l.b16 %v696
        %v713 = vunpack.c.l.b16 %v697
        %v714 = vunpack.c.l.b16 %v698
        %v715 = vpack.c.b16 %v708, %v707
        %v716 = vpack.c.b16 %v710, %v709
        %v717 = vpack.c.b16 %v712, %v711
        %v718 = vpack.c.b16 %v714, %v713
        %v720 = vsel %vm388, %v715, 0
        %v723 = vsel %vm388, %v716, 0
        %v726 = vsel %vm388, %v717, 0
        %v729 = vsel %vm388, %v718, 0
        %731 = vmatprep.subr.bf16.mxu0 0
        %732 = vmatpush1.bf16.msra.mxu0 %v383
        %733 = vmatprep.subr.bf16.mxu0 0
        %734 = vmatpush1.bf16.msra.mxu0 %v384
        %735 = vmatprep.subr.bf16.mxu0 0
        %736 = vmatpush1.bf16.msra.mxu0 %v403
        %737 = vmatprep.subr.bf16.mxu0 0
        %738 = vmatpush1.bf16.msra.mxu0 0
        %739 = vmatprep.subr.bf16.mxu0 0
        %740 = vmatpush1.bf16.msra.mxu0 0
        %741 = vmatprep.subr.bf16.mxu0 0
        %742 = vmatpush1.bf16.msra.mxu0 0
        %743 = vmatprep.subr.bf16.mxu0 0
        %744 = vmatpush1.bf16.msra.mxu0 0
        %745 = vmatprep.subr.bf16.mxu0 0
        %746 = vmatpush1.bf16.msra.mxu0 0
        %747 = vmatprep.subr.bf16.mxu0 0
        %748 = vmatpush1.bf16.msra.mxu0 0
        %749 = vmatprep.subr.bf16.mxu0 0
        %750 = vmatpush1.bf16.msra.mxu0 0
        %751 = vmatprep.subr.bf16.mxu0 0
        %752 = vmatpush1.bf16.msra.mxu0 0
        %753 = vmatprep.subr.bf16.mxu0 0
        %754 = vmatpush1.bf16.msra.mxu0 0
        %755 = vmatprep.subr.bf16.mxu0 0
        %756 = vmatpush1.bf16.msra.mxu0 0
        %757 = vmatprep.subr.bf16.mxu0 0
        %758 = vmatpush1.bf16.msra.mxu0 0
        %759 = vmatprep.subr.bf16.mxu0 0
        %760 = vmatpush1.bf16.msra.mxu0 0
        %761 = vmatprep.subr.bf16.mxu0 0
        %762 = vmatpush1.bf16.msra.mxu0 0
        %763 = vmatprep.mubr.bf16.mxu0 0
        %764 = vmatmul.mubr.bf16.gmra.mrb[0].mxu0 %v720
        %v765 = vpop.f32.mrb[0].mxu0
        %v766 = vadd.f32 0.0, %v765
        %v767 = vpop.f32.mrb[0].mxu0
        %v768 = vpop.f32.mrb[0].mxu0
        %v769 = vadd.f32 0.0, %v768
        %v770 = vpop.f32.mrb[0].mxu0
        %771 = vmatprep.mubr.bf16.mxu0 0
        %772 = vmatmul.mubr.bf16.gmra.mrb[0].mxu0 %v723
        %v773 = vpop.f32.mrb[0].mxu0
        %v774 = vadd.f32 0.0, %v773
        %v775 = vpop.f32.mrb[0].mxu0
        %v776 = vpop.f32.mrb[0].mxu0
        %v777 = vadd.f32 0.0, %v776
        %v778 = vpop.f32.mrb[0].mxu0
        %779 = vmatprep.mubr.bf16.mxu0 0
        %780 = vmatmul.mubr.bf16.gmra.mrb[0].mxu0 %v726
        %v781 = vpop.f32.mrb[0].mxu0
        %v782 = vadd.f32 0.0, %v781
        %v783 = vpop.f32.mrb[0].mxu0
        %v784 = vpop.f32.mrb[0].mxu0
        %v785 = vadd.f32 0.0, %v784
        %v786 = vpop.f32.mrb[0].mxu0
        %787 = vmatprep.mubr.bf16.mxu0 0
        %788 = vmatmul.mubr.bf16.gmra.mrb[0].mxu0 %v729
        %v789 = vpop.f32.mrb[0].mxu0
        %v790 = vadd.f32 0.0, %v789
        %v791 = vpop.f32.mrb[0].mxu0
        %v792 = vpop.f32.mrb[0].mxu0
        %v793 = vadd.f32 0.0, %v792
        %v794 = vpop.f32.mrb[0].mxu0
        %795 = vdwg.mxu0
        %v796 = vmax.f32 %v660, %v766
        %v797 = vmax.f32 %v663, %v769
        %v798 = vmax.f32 %v668, %v774
        %v799 = vmax.f32 %v671, %v777
        %v800 = vmax.f32 %v676, %v782
        %v801 = vmax.f32 %v679, %v785
        %v802 = vmax.f32 %v684, %v790
        %v803 = vmax.f32 %v687, %v793
        %v804 = vmax.f32 %v576, %v796
        %v805 = vmax.f32 %v577, %v797
        %v806 = vmax.f32 %v578, %v798
        %v807 = vmax.f32 %v579, %v799
        %v808 = vmax.f32 %v580, %v800
        %v809 = vmax.f32 %v581, %v801
        %v810 = vmax.f32 %v582, %v802
        %v811 = vmax.f32 %v583, %v803
        %v812 = vld [vmem:[%s2] sm:$0x1]
        %v814 = vlaneseq
        %v815 = vshrl.u32 %v814, 7
        %v816 = vsub.s32 0, %v815
        %v817 = vrot.slane %v812, %v816
        %v819 = vadd.f32 %v804, %v817
        %v820 = vadd.f32 %v805, %v817
        %v821 = vadd.f32 %v806, %v817
        %v822 = vadd.f32 %v807, %v817
        %v823 = vadd.f32 %v808, %v817
        %v824 = vadd.f32 %v809, %v817
        %v825 = vadd.f32 %v810, %v817
        %v826 = vadd.f32 %v811, %v817
        %v827 = vmax.f32 %v819, 0.0
        %v828 = vmax.f32 %v820, 0.0
        %v829 = vmax.f32 %v821, 0.0
        %v830 = vmax.f32 %v822, 0.0
        %v831 = vmax.f32 %v823, 0.0
        %v832 = vmax.f32 %v824, 0.0
        %v833 = vmax.f32 %v825, 0.0
        %v834 = vmax.f32 %v826, 0.0
        %v835 = vpack.c.bf16 %v828, %v827
        %v836 = vpack.c.bf16 %v830, %v829
        %v837 = vpack.c.bf16 %v832, %v831
        %v838 = vpack.c.bf16 %v834, %v833
        %v843 = vunpack.c.l.b16 %v835
        %v844 = vunpack.c.h.b16 %v835
        %v845 = vunpack.c.l.b16 %v836
        %v846 = vunpack.c.h.b16 %v836
        %v847 = vunpack.c.l.b16 %v837
        %v848 = vunpack.c.h.b16 %v837
        %v849 = vunpack.c.l.b16 %v838
        %v850 = vunpack.c.h.b16 %v838
        %v851 = vpack.c.b16 %v843, %v843
        %v852 = vpack.c.b16 %v844, %v844
        %v853 = vpack.c.b16 %v845, %v845
        %v854 = vpack.c.b16 %v846, %v846
        %v855 = vpack.c.b16 %v847, %v847
        %v856 = vpack.c.b16 %v848, %v848
        %v857 = vpack.c.b16 %v849, %v849
        %v858 = vpack.c.b16 %v850, %v850
        %vm867 = vcmask 60416
        %868 = vst.msk [vmem:[%s337] sm:$0xf] %vm867, %v851
        %869 = vst.msk [vmem:[%s337 + $0x4] sm:$0xf] %vm867, %v852
        %870 = vst.msk [vmem:[%s337 + $0x8] sm:$0xf] %vm867, %v853
        %871 = vst.msk [vmem:[%s337 + $0xc] sm:$0xf] %vm867, %v854
        %872 = vst.msk [vmem:[%s337 + $0x10] sm:$0xf] %vm867, %v855
        %873 = vst.msk [vmem:[%s337 + $0x14] sm:$0xf] %vm867, %v856
        %874 = vst.msk [vmem:[%s337 + $0x18] sm:$0xf] %vm867, %v857
        %875 = vst.msk [vmem:[%s337 + $0x1c] sm:$0xf] %vm867, %v858
        %s876 = smul.u32 8, %s14
        %p877 = scmp.lt.s32.totalorder %s876, 15
        %s878 = scalar_select %p877, %s876, 15
        %s879 = smul.addr %s878, 4
        %s880 = scalar_lea.vmem %s3, %s879
        // Predicated region
        $region74: #{baseline_cnn_forward.3} parent=68 // pred_check
          %p881 = pneg %p100
        $region75: #{baseline_cnn_forward.3} parent=68 // pred_check_branch
          %883 = sbr.rel (%p881) target = $region77
        $region76: #{baseline_cnn_forward.3} parent=68 // pred_region
          %s884 = smul.u32 8, %s14
        $region77: #{baseline_cnn_forward.3} parent=68 // pred_fallthru
          _
      $region69: #{baseline_cnn_forward.3} parent=5 // pred_fallthru
        _
      %p885 = scmp.le.s32.totalorder 2, %s9
      // Predicated region
      $region78: #{baseline_cnn_forward.3} parent=5 // pred_check
        %p886 = pneg %p885
      $region79: #{baseline_cnn_forward.3} parent=5 // pred_check_branch
        %888 = sbr.rel (%p886) target = $region81
      $region80: #{baseline_cnn_forward.3} parent=5 // pred_region
        %s889 = ssub.s32 %s9, 2
        // Predicated region
        $region82: #{baseline_cnn_forward.3} parent=80 // pred_check
          %p890 = pneg %p106
        $region83: #{baseline_cnn_forward.3} parent=80 // pred_check_branch
          %892 = sbr.rel (%p890) target = $region85
        $region84: #{baseline_cnn_forward.3} parent=80 // pred_region
          %s893 = smul.u32 8, %s15
          %p894 = scmp.lt.s32.totalorder %s893, 15
          %s895 = scalar_select %p894, %s893, 15
          %s896 = smul.addr %s895, 4
          %s897 = scalar_lea.vmem %s3, %s896
        $region85: #{baseline_cnn_forward.3} parent=80 // pred_fallthru
          _
      $region81: #{baseline_cnn_forward.3} parent=5 // pred_fallthru
        _
    $region6: #{baseline_cnn_forward.3} parent=1 // loop_footer
      %s13 = sadd.s32 1, %s9
    $region7: #{baseline_cnn_forward.3} parent=1 // loop_footer_branch
      %8 = sbr.rel target = $region3
    $region8: #{baseline_cnn_forward.3} parent=1 // loop_exit
      _

// kernel: baseline_cnn_forward.4
$region0: #{baseline_cnn_forward.4}
  #allocation0 [shape = 'u32[]', space=smem, size = 0x4, offset = 0x4, fixed_abs, tag = 'smem constant byte address 0x4 - core index']
  #allocation1 [shape = 'u32[144,128]{1,0:T(1,128)}', space=vmem, size = 0x12000, scoped, tag = 'internal scratch']
  %s0 = inlined_call_operand.vmem [shape: bf16[4,32,72], index: 0, kind: input, shape index: {}]
  %s1 = inlined_call_operand.vmem [shape: bf16[72,16], index: 1, kind: input, shape index: {}]
  %s2 = inlined_call_operand.vmem [shape: f32[1,16], index: 2, kind: input, shape index: {}]
  %s3 = inlined_call_operand.vmem [shape: bf16[32,16], index: 3, kind: output, shape index: {}]
  %s4 = sld [smem:[#allocation0]]
  $region86: #{baseline_cnn_forward.4} parent=0
    _
  %s6 = ssub.s32 1, %s4
  %s7 = scalar_select 0, %s6, %s4
  $region1: #{baseline_cnn_forward.4} parent=0
    #allocation2 [shape = 'u8[32768]{0}', space=vmem, size = 0x8000, scoped, tag = 'input window, operand 0']
    loop: start=0, step=1, limit=4
    $region2: #{baseline_cnn_forward.4} parent=1 // loop_pre_header
      _
    $region3: #{baseline_cnn_forward.4} parent=1 // loop_header
      %s9 = sphi 0, %s13
      %p10 = scmp.ge.s32.totalorder %s9, 4
      %s19 = sphi 0, %s21
      %s22 = sphi 0, %s19
      %s23 = sphi 0, %s22
      %s39 = sphi 0, %s23
      %s43 = sphi 0, %s43
      %s45 = sphi 0, %s43
      %s46 = sphi 0, %s45
      %s60 = sphi 0, %s46
      %s64 = sphi 0, %s64
      %s66 = sphi 0, %s64
      %s67 = sphi 0, %s66
      %s81 = sphi 0, %s67
      %s87 = sphi 0, %s89
      %s90 = sphi 0, %s87
      %s91 = sphi 0, %s90
      %s107 = sphi 0, %s91
    $region4: #{baseline_cnn_forward.4} parent=1 // loop_header_branch
      %12 = sbr.rel (%p10) target = $region8
    $region5: #{baseline_cnn_forward.4} parent=1 // loop_body
      %s14 = ssub.s32 %s9, 1
      %s15 = ssub.s32 %s9, 2
      %s16 = sadd.s32 %s9, 1
      %s17 = ssub.s32 %s9, %s16
      %p18 = scmp.eq.s32.totalorder %s17, 0
      %s20 = sadd.s32 %s19, 1
      %s21 = scalar_select %p18, %s19, %s20
      %p24 = pneg %p18
      %p25 = scmp.eq.s32.totalorder %s9, 1
      %p26 = por %p24, %p25
      %p27 = scmp.ne.s32.totalorder %s19, %s22
      %p28 = scmp.eq.s32.totalorder %s9, 0
      %p29 = por %p27, %p28
      %p30 = scmp.ne.s32.totalorder %s19, %s22
      %p31 = scmp.eq.s32.totalorder %s14, 1
      %p32 = por %p30, %p31
      %p33 = scmp.ne.s32.totalorder %s22, %s23
      %p34 = scmp.eq.s32.totalorder %s14, 0
      %p35 = por %p33, %p34
      %p36 = scmp.ne.s32.totalorder %s22, %s23
      %p37 = scmp.eq.s32.totalorder %s15, 1
      %p38 = por %p36, %p37
      %p40 = scmp.ne.s32.totalorder %s23, %s39
      %p41 = scmp.eq.s32.totalorder %s15, 0
      %p42 = por %p40, %p41
      %s44 = sadd.s32 %s43, 1
      %p47 = scmp.eq.s32.totalorder %s9, 1
      %p48 = scmp.ne.s32.totalorder %s43, %s45
      %p49 = scmp.eq.s32.totalorder %s9, 0
      %p50 = por %p48, %p49
      %p51 = scmp.ne.s32.totalorder %s43, %s45
      %p52 = scmp.eq.s32.totalorder %s14, 1
      %p53 = por %p51, %p52
      %p54 = scmp.ne.s32.totalorder %s45, %s46
      %p55 = scmp.eq.s32.totalorder %s14, 0
      %p56 = por %p54, %p55
      %p57 = scmp.ne.s32.totalorder %s45, %s46
      %p58 = scmp.eq.s32.totalorder %s15, 1
      %p59 = por %p57, %p58
      %p61 = scmp.ne.s32.totalorder %s46, %s60
      %p62 = scmp.eq.s32.totalorder %s15, 0
      %p63 = por %p61, %p62
      %s65 = sadd.s32 %s64, 1
      %p68 = scmp.eq.s32.totalorder %s9, 1
      %p69 = scmp.ne.s32.totalorder %s64, %s66
      %p70 = scmp.eq.s32.totalorder %s9, 0
      %p71 = por %p69, %p70
      %p72 = scmp.ne.s32.totalorder %s64, %s66
      %p73 = scmp.eq.s32.totalorder %s14, 1
      %p74 = por %p72, %p73
      %p75 = scmp.ne.s32.totalorder %s66, %s67
      %p76 = scmp.eq.s32.totalorder %s14, 0
      %p77 = por %p75, %p76
      %p78 = scmp.ne.s32.totalorder %s66, %s67
      %p79 = scmp.eq.s32.totalorder %s15, 1
      %p80 = por %p78, %p79
      %p82 = scmp.ne.s32.totalorder %s67, %s81
      %p83 = scmp.eq.s32.totalorder %s15, 0
      %p84 = por %p82, %p83
      %s85 = ssub.s32 %s9, %s16
      %p86 = scmp.eq.s32.totalorder %s85, 0
      %s88 = sadd.s32 %s87, 1
      %s89 = scalar_select %p86, %s87, %s88
      %p92 = pneg %p86
      %p93 = scmp.eq.s32.totalorder %s9, 1
      %p94 = por %p92, %p93
      %p95 = scmp.ne.s32.totalorder %s87, %s90
      %p96 = scmp.eq.s32.totalorder %s9, 0
      %p97 = por %p95, %p96
      %p98 = scmp.ne.s32.totalorder %s87, %s90
      %p99 = scmp.eq.s32.totalorder %s14, 1
      %p100 = por %p98, %p99
      %p101 = scmp.ne.s32.totalorder %s90, %s91
      %p102 = scmp.eq.s32.totalorder %s14, 0
      %p103 = por %p101, %p102
      %p104 = scmp.ne.s32.totalorder %s90, %s91
      %p105 = scmp.eq.s32.totalorder %s15, 1
      %p106 = por %p104, %p105
      %p108 = scmp.ne.s32.totalorder %s91, %s107
      %p109 = scmp.eq.s32.totalorder %s15, 0
      %p110 = por %p108, %p109
      %p111 = scmp.le.s32.totalorder 1, %s9
      %p112 = scmp.lt.s32.totalorder %s9, 3
      %p113 = pnand %p111, %p112
      %p114 = pneg %p113
      // Predicated region
      $region9: #{baseline_cnn_forward.4} parent=5 // pred_check
        _
      $region10: #{baseline_cnn_forward.4} parent=5 // pred_check_branch
        %116 = sbr.rel (%p113) target = $region12
      $region11: #{baseline_cnn_forward.4} parent=5 // pred_region
        %s117 = ssub.s32 %s9, 1
        // Predicated region
        $region13: #{baseline_cnn_forward.4} parent=11 // pred_check
          %p118 = pneg %p56
        $region14: #{baseline_cnn_forward.4} parent=11 // pred_check_branch
          %120 = sbr.rel (%p118) target = $region16
        $region15: #{baseline_cnn_forward.4} parent=11 // pred_region
          _
        $region16: #{baseline_cnn_forward.4} parent=11 // pred_fallthru
          _
        // Predicated region
        $region17: #{baseline_cnn_forward.4} parent=11 // pred_check
          %p121 = pneg %p77
        $region18: #{baseline_cnn_forward.4} parent=11 // pred_check_branch
          %123 = sbr.rel (%p121) target = $region20
        $region19: #{baseline_cnn_forward.4} parent=11 // pred_region
          _
        $region20: #{baseline_cnn_forward.4} parent=11 // pred_fallthru
          _
      $region12: #{baseline_cnn_forward.4} parent=5 // pred_fallthru
        _
      %p124 = scmp.lt.s32.totalorder %s9, 2
      // Predicated region
      $region21: #{baseline_cnn_forward.4} parent=5 // pred_check
        %p125 = pneg %p124
      $region22: #{baseline_cnn_forward.4} parent=5 // pred_check_branch
        %127 = sbr.rel (%p125) target = $region24
      $region23: #{baseline_cnn_forward.4} parent=5 // pred_region
        // Predicated region
        $region25: #{baseline_cnn_forward.4} parent=23 // pred_check
          %p128 = pneg %p29
        $region26: #{baseline_cnn_forward.4} parent=23 // pred_check_branch
          %130 = sbr.rel (%p128) target = $region28
        $region27: #{baseline_cnn_forward.4} parent=23 // pred_region
          %s131 = sand.u32 %s19, 1
          %s132 = sand.u32 %s19, 1
          %s133 = smul.addr %s132, 32
          %s134 = scalar_lea.vmem [#allocation2], %s133
          %s135 = smul.u32 2, %s9
          %s136 = smul.addr %s135, 4
          %s137 = scalar_lea.vmem %s0, %s136
          // Predicated region
          $region29: #{baseline_cnn_forward.4} parent=27 // pred_check
            _
          $region30: #{baseline_cnn_forward.4} parent=27 // pred_check_branch
            %139 = sbr.rel (0) target = $region32
          $region31: #{baseline_cnn_forward.4} parent=27 // pred_region
            // Predicated region
            $region33: #{baseline_cnn_forward.4} parent=31 // pred_check
              _
            $region34: #{baseline_cnn_forward.4} parent=31 // pred_check_branch
              %141 = sbr.rel target = $region36
            $region35: #{baseline_cnn_forward.4} parent=31 // pred_region
              // Predicated region
              $region48: #{baseline_cnn_forward.4} parent=35 // pred_check
                _
              $region49: #{baseline_cnn_forward.4} parent=35 // pred_check_branch
                %170 = sbr.rel (0) target = $region51
              $region50: #{baseline_cnn_forward.4} parent=35 // pred_region
                loop: start=0, step=1, limit=1
                $region52: #{baseline_cnn_forward.4} parent=50 // loop_pre_header
                  _
                $region53: #{baseline_cnn_forward.4} parent=50 // loop_header
                  %s172 = sphi 0, %s176
                  %p173 = scmp.ge.s32.totalorder %s172, 1
                  %s177 = sphi %s137, %s137
                  %s178 = sphi %s134, %s134
                $region54: #{baseline_cnn_forward.4} parent=50 // loop_header_branch
                  %175 = sbr.rel (%p173) target = $region58
                $region55: #{baseline_cnn_forward.4} parent=50 // loop_body
                  _
                $region56: #{baseline_cnn_forward.4} parent=50 // loop_footer
                  %s176 = sadd.s32 1, %s172
                $region57: #{baseline_cnn_forward.4} parent=50 // loop_footer_branch
                  %171 = sbr.rel target = $region53
                $region58: #{baseline_cnn_forward.4} parent=50 // loop_exit
                  _
                loop: start=0, step=1, limit=1
                $region59: #{baseline_cnn_forward.4} parent=50 // loop_pre_header
                  _
                $region60: #{baseline_cnn_forward.4} parent=50 // loop_header
                  %s181 = sphi 0, %s185
                  %p182 = scmp.ge.s32.totalorder %s181, 1
                  %s186 = sphi %s137, %s137
                  %s187 = sphi %s134, %s134
                $region61: #{baseline_cnn_forward.4} parent=50 // loop_header_branch
                  %184 = sbr.rel (%p182) target = $region65
                $region62: #{baseline_cnn_forward.4} parent=50 // loop_body
                  %v188 = vld [vmem:[%s186] sm:$0xf]
                  %189 = vst [vmem:[%s187] sm:$0xf] %v188
                  %v190 = vld [vmem:[%s186 + $0x4] sm:$0xf]
                  %191 = vst [vmem:[%s187 + $0x4] sm:$0xf] %v190
                  %v192 = vld [vmem:[%s186 + $0x10] sm:$0xf]
                  %193 = vst [vmem:[%s187 + $0x8] sm:$0xf] %v192
                  %v194 = vld [vmem:[%s186 + $0x14] sm:$0xf]
                  %195 = vst [vmem:[%s187 + $0xc] sm:$0xf] %v194
                  %v196 = vld [vmem:[%s186 + $0x20] sm:$0xf]
                  %197 = vst [vmem:[%s187 + $0x10] sm:$0xf] %v196
                  %v198 = vld [vmem:[%s186 + $0x24] sm:$0xf]
                  %199 = vst [vmem:[%s187 + $0x14] sm:$0xf] %v198
                  %v200 = vld [vmem:[%s186 + $0x30] sm:$0xf]
                  %201 = vst [vmem:[%s187 + $0x18] sm:$0xf] %v200
                  %v202 = vld [vmem:[%s186 + $0x34] sm:$0xf]
                  %203 = vst [vmem:[%s187 + $0x1c] sm:$0xf] %v202
                $region63: #{baseline_cnn_forward.4} parent=50 // loop_footer
                  %s185 = sadd.s32 1, %s181
                $region64: #{baseline_cnn_forward.4} parent=50 // loop_footer_branch
                  %180 = sbr.rel target = $region60
                $region65: #{baseline_cnn_forward.4} parent=50 // loop_exit
                  _
              $region51: #{baseline_cnn_forward.4} parent=35 // pred_fallthru
                _
            $region36: #{baseline_cnn_forward.4} parent=31 // pred_fallthru
              _
            // Predicated region
            $region37: #{baseline_cnn_forward.4} parent=31 // pred_check
              _
            $region38: #{baseline_cnn_forward.4} parent=31 // pred_check_branch
              %143 = sbr.rel (0) target = $region40
            $region39: #{baseline_cnn_forward.4} parent=31 // pred_region
              loop: start=0, step=1, limit=1
              $region41: #{baseline_cnn_forward.4} parent=39 // loop_pre_header
                _
              $region42: #{baseline_cnn_forward.4} parent=39 // loop_header
                %s146 = sphi 0, %s150
                %p147 = scmp.ge.s32.totalorder %s146, 1
                %s151 = sphi %s137, %s137
                %s152 = sphi %s134, %s134
              $region43: #{baseline_cnn_forward.4} parent=39 // loop_header_branch
                %149 = sbr.rel (%p147) target = $region47
              $region44: #{baseline_cnn_forward.4} parent=39 // loop_body
                %v153 = vld [vmem:[%s151] sm:$0xf]
                %154 = vst [vmem:[%s152] sm:$0xf] %v153
                %v155 = vld [vmem:[%s151 + $0x4] sm:$0xf]
                %156 = vst [vmem:[%s152 + $0x4] sm:$0xf] %v155
                %v157 = vld [vmem:[%s151 + $0x10] sm:$0xf]
                %158 = vst [vmem:[%s152 + $0x8] sm:$0xf] %v157
                %v159 = vld [vmem:[%s151 + $0x14] sm:$0xf]
                %160 = vst [vmem:[%s152 + $0xc] sm:$0xf] %v159
                %v161 = vld [vmem:[%s151 + $0x20] sm:$0xf]
                %162 = vst [vmem:[%s152 + $0x10] sm:$0xf] %v161
                %v163 = vld [vmem:[%s151 + $0x24] sm:$0xf]
                %164 = vst [vmem:[%s152 + $0x14] sm:$0xf] %v163
                %v165 = vld [vmem:[%s151 + $0x30] sm:$0xf]
                %166 = vst [vmem:[%s152 + $0x18] sm:$0xf] %v165
                %v167 = vld [vmem:[%s151 + $0x34] sm:$0xf]
                %168 = vst [vmem:[%s152 + $0x1c] sm:$0xf] %v167
              $region45: #{baseline_cnn_forward.4} parent=39 // loop_footer
                %s150 = sadd.s32 1, %s146
              $region46: #{baseline_cnn_forward.4} parent=39 // loop_footer_branch
                %145 = sbr.rel target = $region42
              $region47: #{baseline_cnn_forward.4} parent=39 // loop_exit
                _
            $region40: #{baseline_cnn_forward.4} parent=31 // pred_fallthru
              _
          $region32: #{baseline_cnn_forward.4} parent=27 // pred_fallthru
            _
          %204 = vnop
        $region28: #{baseline_cnn_forward.4} parent=23 // pred_fallthru
          _
      $region24: #{baseline_cnn_forward.4} parent=5 // pred_fallthru
        _
      %p205 = scmp.le.s32.totalorder 1, %s9
      %p206 = scmp.lt.s32.totalorder %s9, 3
      %p207 = pnand %p205, %p206
      %p208 = pneg %p207
      // Predicated region
      $region66: #{baseline_cnn_forward.4} parent=5 // pred_check
        _
      $region67: #{baseline_cnn_forward.4} parent=5 // pred_check_branch
        %210 = sbr.rel (%p207) target = $region69
      $region68: #{baseline_cnn_forward.4} parent=5 // pred_region
        %s211 = ssub.s32 %s9, 1
        %s212 = sand.u32 %s22, 1
        %s213 = sand.u32 %s22, 1
        %s214 = smul.addr %s213, 32
        %s215 = scalar_lea.vmem [#allocation2], %s214
        // Predicated region
        $region70: #{baseline_cnn_forward.4} parent=68 // pred_check
          %p216 = pneg %p35
        $region71: #{baseline_cnn_forward.4} parent=68 // pred_check_branch
          %218 = sbr.rel (%p216) target = $region73
        $region72: #{baseline_cnn_forward.4} parent=68 // pred_region
          _
        $region73: #{baseline_cnn_forward.4} parent=68 // pred_fallthru
          _
        %s219 = sand.u32 %s22, 1
        %s220 = sand.u32 %s22, 1
        %s221 = smul.addr %s220, 32
        %s222 = scalar_lea.vmem [#allocation2], %s221
        %p223 = pneg %p35
        %p224 = pneg %p32
        %p225 = pneg %p56
        %p226 = pneg %p53
        %p227 = pneg %p77
        %p228 = pneg %p74
        %p229 = pneg %p103
        %p230 = pneg %p100
        %s231 = smul.u32 2, %s14
        %p232 = scmp.lt.s32.totalorder %s231, 3
        %s233 = scalar_select %p232, %s231, 3
        %s234 = smul.addr %s233, 4
        %s235 = scalar_lea.vmem %s3, %s234
        %s236 = smul.u32 2, %s14
        %s237 = smul.u32 2, %s14
        %p238 = scmp.lt.s32.totalorder %s237, 3
        %s239 = scalar_select %p238, %s237, 3
        %s240 = smul.addr %s239, 4
        %s241 = scalar_lea.vmem %s3, %s240
        %s242 = smul.u32 2, %s14
        %v244 = vld [vmem:[%s1] sm:$0xf]
        %v245 = vld [vmem:[%s1 + $0x4] sm:$0xf]
        %v246 = vld [vmem:[%s1 + $0x8] sm:$0xf]
        %v247 = vld [vmem:[%s1 + $0xc] sm:$0xf]
        %v248 = vld [vmem:[%s1 + $0x10] sm:$0xf]
        %v249 = vld [vmem:[%s1 + $0x14] sm:$0xf]
        %v250 = vld [vmem:[%s1 + $0x18] sm:$0xf]
        %v251 = vld [vmem:[%s1 + $0x1c] sm:$0xf]
        %v252 = vld [vmem:[%s1 + $0x20] sm:$0xf]
        %v253 = vld [vmem:[%s215] sm:$0xf]
        %v254 = vld [vmem:[%s215 + $0x4] sm:$0xf]
        %v257 = vunpack.c.l.b16 %v253
        %v258 = vunpack.c.l.b16 %v254
        %v259 = vpack.c.b16 %v258, %v257
        %v269 = vunpack.c.l.b16 %v244
        %v270 = vunpack.c.l.b16 %v245
        %v271 = vunpack.c.l.b16 %v246
        %v272 = vunpack.c.l.b16 %v247
        %v273 = vunpack.c.l.b16 %v248
        %v274 = vunpack.c.l.b16 %v249
        %v275 = vunpack.c.l.b16 %v250
        %v276 = vunpack.c.l.b16 %v251
        %v277 = vunpack.c.l.b16 %v252
        %v278 = vpack.c.b16 %v270, %v269
        %v279 = vpack.c.b16 %v272, %v271
        %v280 = vpack.c.b16 %v274, %v273
        %v281 = vpack.c.b16 %v276, %v275
        %v282 = vpack.c.b16 %v277, %v277
        %vm287 = vcmask 588800
        %v289 = vsel %vm287, %v259, 0
        %vm291 = vcmask 1043456
        %v293 = vsel %vm291, %v282, 0
        %295 = vmatprep.subr.bf16.mxu0 0
        %296 = vmatpush1.bf16.msra.mxu0 %v278
        %297 = vmatprep.subr.bf16.mxu0 0
        %298 = vmatpush1.bf16.msra.mxu0 %v279
        %299 = vmatprep.subr.bf16.mxu0 0
        %300 = vmatpush1.bf16.msra.mxu0 %v280
        %301 = vmatprep.subr.bf16.mxu0 0
        %302 = vmatpush1.bf16.msra.mxu0 %v281
        %303 = vmatprep.subr.bf16.mxu0 0
        %304 = vmatpush1.bf16.msra.mxu0 %v293
        %305 = vmatprep.subr.bf16.mxu0 0
        %306 = vmatpush1.bf16.msra.mxu0 0
        %307 = vmatprep.subr.bf16.mxu0 0
        %308 = vmatpush1.bf16.msra.mxu0 0
        %309 = vmatprep.subr.bf16.mxu0 0
        %310 = vmatpush1.bf16.msra.mxu0 0
        %311 = vmatprep.subr.bf16.mxu0 0
        %312 = vmatpush1.bf16.msra.mxu0 0
        %313 = vmatprep.subr.bf16.mxu0 0
        %314 = vmatpush1.bf16.msra.mxu0 0
        %315 = vmatprep.subr.bf16.mxu0 0
        %316 = vmatpush1.bf16.msra.mxu0 0
        %317 = vmatprep.subr.bf16.mxu0 0
        %318 = vmatpush1.bf16.msra.mxu0 0
        %319 = vmatprep.subr.bf16.mxu0 0
        %320 = vmatpush1.bf16.msra.mxu0 0
        %321 = vmatprep.subr.bf16.mxu0 0
        %322 = vmatpush1.bf16.msra.mxu0 0
        %323 = vmatprep.subr.bf16.mxu0 0
        %324 = vmatpush1.bf16.msra.mxu0 0
        %325 = vmatprep.subr.bf16.mxu0 0
        %326 = vmatpush1.bf16.msra.mxu0 0
        %327 = vmatprep.mubr.bf16.mxu0 0
        %328 = vmatmul.mubr.bf16.gmra.mrb[0].mxu0 %v289
        %v329 = vpop.f32.mrb[0].mxu0
        %v330 = vadd.f32 0.0, %v329
        %v331 = vpop.f32.mrb[0].mxu0
        %v332 = vpop.f32.mrb[0].mxu0
        %v333 = vadd.f32 0.0, %v332
        %v334 = vpop.f32.mrb[0].mxu0
        %335 = vdwg.mxu0
        %s336 = scalar_lea.vmem %s215, 8 [#allocation2]
        %v337 = vld [vmem:[%s336] sm:$0xf]
        %v338 = vld [vmem:[%s336 + $0x4] sm:$0xf]
        %v341 = vunpack.c.l.b16 %v337
        %v342 = vunpack.c.l.b16 %v338
        %v343 = vpack.c.b16 %v342, %v341
        %v345 = vsel %vm287, %v343, 0
        %347 = vmatprep.subr.bf16.mxu0 0
        %348 = vmatpush1.bf16.msra.mxu0 %v278
        %349 = vmatprep.subr.bf16.mxu0 0
        %350 = vmatpush1.bf16.msra.mxu0 %v279
        %351 = vmatprep.subr.bf16.mxu0 0
        %352 = vmatpush1.bf16.msra.mxu0 %v280
        %353 = vmatprep.subr.bf16.mxu0 0
        %354 = vmatpush1.bf16.msra.mxu0 %v281
        %355 = vmatprep.subr.bf16.mxu0 0
        %356 = vmatpush1.bf16.msra.mxu0 %v293
        %357 = vmatprep.subr.bf16.mxu0 0
        %358 = vmatpush1.bf16.msra.mxu0 0
        %359 = vmatprep.subr.bf16.mxu0 0
        %360 = vmatpush1.bf16.msra.mxu0 0
        %361 = vmatprep.subr.bf16.mxu0 0
        %362 = vmatpush1.bf16.msra.mxu0 0
        %363 = vmatprep.subr.bf16.mxu0 0
        %364 = vmatpush1.bf16.msra.mxu0 0
        %365 = vmatprep.subr.bf16.mxu0 0
        %366 = vmatpush1.bf16.msra.mxu0 0
        %367 = vmatprep.subr.bf16.mxu0 0
        %368 = vmatpush1.bf16.msra.mxu0 0
        %369 = vmatprep.subr.bf16.mxu0 0
        %370 = vmatpush1.bf16.msra.mxu0 0
        %371 = vmatprep.subr.bf16.mxu0 0
        %372 = vmatpush1.bf16.msra.mxu0 0
        %373 = vmatprep.subr.bf16.mxu0 0
        %374 = vmatpush1.bf16.msra.mxu0 0
        %375 = vmatprep.subr.bf16.mxu0 0
        %376 = vmatpush1.bf16.msra.mxu0 0
        %377 = vmatprep.subr.bf16.mxu0 0
        %378 = vmatpush1.bf16.msra.mxu0 0
        %379 = vmatprep.mubr.bf16.mxu0 0
        %380 = vmatmul.mubr.bf16.gmra.mrb[0].mxu0 %v345
        %v381 = vpop.f32.mrb[0].mxu0
        %v382 = vadd.f32 0.0, %v381
        %v383 = vpop.f32.mrb[0].mxu0
        %v384 = vpop.f32.mrb[0].mxu0
        %v385 = vadd.f32 0.0, %v384
        %v386 = vpop.f32.mrb[0].mxu0
        %387 = vdwg.mxu0
        %v388 = vmax.f32 %v330, %v382
        %v389 = vmax.f32 %v333, %v385
        %s390 = scalar_lea.vmem %s215, 16 [#allocation2]
        %v391 = vld [vmem:[%s390] sm:$0xf]
        %v392 = vld [vmem:[%s390 + $0x4] sm:$0xf]
        %v395 = vunpack.c.l.b16 %v391
        %v396 = vunpack.c.l.b16 %v392
        %v397 = vpack.c.b16 %v396, %v395
        %v399 = vsel %vm287, %v397, 0
        %401 = vmatprep.subr.bf16.mxu0 0
        %402 = vmatpush1.bf16.msra.mxu0 %v278
        %403 = vmatprep.subr.bf16.mxu0 0
        %404 = vmatpush1.bf16.msra.mxu0 %v279
        %405 = vmatprep.subr.bf16.mxu0 0
        %406 = vmatpush1.bf16.msra.mxu0 %v280
        %407 = vmatprep.subr.bf16.mxu0 0
        %408 = vmatpush1.bf16.msra.mxu0 %v281
        %409 = vmatprep.subr.bf16.mxu0 0
        %410 = vmatpush1.bf16.msra.mxu0 %v293
        %411 = vmatprep.subr.bf16.mxu0 0
        %412 = vmatpush1.bf16.msra.mxu0 0
        %413 = vmatprep.subr.bf16.mxu0 0
        %414 = vmatpush1.bf16.msra.mxu0 0
        %415 = vmatprep.subr.bf16.mxu0 0
        %416 = vmatpush1.bf16.msra.mxu0 0
        %417 = vmatprep.subr.bf16.mxu0 0
        %418 = vmatpush1.bf16.msra.mxu0 0
        %419 = vmatprep.subr.bf16.mxu0 0
        %420 = vmatpush1.bf16.msra.mxu0 0
        %421 = vmatprep.subr.bf16.mxu0 0
        %422 = vmatpush1.bf16.msra.mxu0 0
        %423 = vmatprep.subr.bf16.mxu0 0
        %424 = vmatpush1.bf16.msra.mxu0 0
        %425 = vmatprep.subr.bf16.mxu0 0
        %426 = vmatpush1.bf16.msra.mxu0 0
        %427 = vmatprep.subr.bf16.mxu0 0
        %428 = vmatpush1.bf16.msra.mxu0 0
        %429 = vmatprep.subr.bf16.mxu0 0
        %430 = vmatpush1.bf16.msra.mxu0 0
        %431 = vmatprep.subr.bf16.mxu0 0
        %432 = vmatpush1.bf16.msra.mxu0 0
        %433 = vmatprep.mubr.bf16.mxu0 0
        %434 = vmatmul.mubr.bf16.gmra.mrb[0].mxu0 %v399
        %v435 = vpop.f32.mrb[0].mxu0
        %v436 = vadd.f32 0.0, %v435
        %v437 = vpop.f32.mrb[0].mxu0
        %v438 = vpop.f32.mrb[0].mxu0
        %v439 = vadd.f32 0.0, %v438
        %v440 = vpop.f32.mrb[0].mxu0
        %441 = vdwg.mxu0
        %s442 = scalar_lea.vmem %s215, 24 [#allocation2]
        %v443 = vld [vmem:[%s442] sm:$0xf]
        %v444 = vld [vmem:[%s442 + $0x4] sm:$0xf]
        %v447 = vunpack.c.l.b16 %v443
        %v448 = vunpack.c.l.b16 %v444
        %v449 = vpack.c.b16 %v448, %v447
        %v451 = vsel %vm287, %v449, 0
        %453 = vmatprep.subr.bf16.mxu0 0
        %454 = vmatpush1.bf16.msra.mxu0 %v278
        %455 = vmatprep.subr.bf16.mxu0 0
        %456 = vmatpush1.bf16.msra.mxu0 %v279
        %457 = vmatprep.subr.bf16.mxu0 0
        %458 = vmatpush1.bf16.msra.mxu0 %v280
        %459 = vmatprep.subr.bf16.mxu0 0
        %460 = vmatpush1.bf16.msra.mxu0 %v281
        %461 = vmatprep.subr.bf16.mxu0 0
        %462 = vmatpush1.bf16.msra.mxu0 %v293
        %463 = vmatprep.subr.bf16.mxu0 0
        %464 = vmatpush1.bf16.msra.mxu0 0
        %465 = vmatprep.subr.bf16.mxu0 0
        %466 = vmatpush1.bf16.msra.mxu0 0
        %467 = vmatprep.subr.bf16.mxu0 0
        %468 = vmatpush1.bf16.msra.mxu0 0
        %469 = vmatprep.subr.bf16.mxu0 0
        %470 = vmatpush1.bf16.msra.mxu0 0
        %471 = vmatprep.subr.bf16.mxu0 0
        %472 = vmatpush1.bf16.msra.mxu0 0
        %473 = vmatprep.subr.bf16.mxu0 0
        %474 = vmatpush1.bf16.msra.mxu0 0
        %475 = vmatprep.subr.bf16.mxu0 0
        %476 = vmatpush1.bf16.msra.mxu0 0
        %477 = vmatprep.subr.bf16.mxu0 0
        %478 = vmatpush1.bf16.msra.mxu0 0
        %479 = vmatprep.subr.bf16.mxu0 0
        %480 = vmatpush1.bf16.msra.mxu0 0
        %481 = vmatprep.subr.bf16.mxu0 0
        %482 = vmatpush1.bf16.msra.mxu0 0
        %483 = vmatprep.subr.bf16.mxu0 0
        %484 = vmatpush1.bf16.msra.mxu0 0
        %485 = vmatprep.mubr.bf16.mxu0 0
        %486 = vmatmul.mubr.bf16.gmra.mrb[0].mxu0 %v451
        %v487 = vpop.f32.mrb[0].mxu0
        %v488 = vadd.f32 0.0, %v487
        %v489 = vpop.f32.mrb[0].mxu0
        %v490 = vpop.f32.mrb[0].mxu0
        %v491 = vadd.f32 0.0, %v490
        %v492 = vpop.f32.mrb[0].mxu0
        %493 = vdwg.mxu0
        %v494 = vmax.f32 %v436, %v488
        %v495 = vmax.f32 %v439, %v491
        %v496 = vmax.f32 %v388, %v494
        %v497 = vmax.f32 %v389, %v495
        %v498 = vld [vmem:[%s2] sm:$0x1]
        %v500 = vlaneseq
        %v501 = vshrl.u32 %v500, 7
        %v502 = vsub.s32 0, %v501
        %v503 = vrot.slane %v498, %v502
        %v505 = vadd.f32 %v496, %v503
        %v506 = vadd.f32 %v497, %v503
        %v507 = vmax.f32 %v505, 0.0
        %v508 = vmax.f32 %v506, 0.0
        %v509 = vpack.c.bf16 %v508, %v507
        %v511 = vunpack.c.l.b16 %v509
        %v512 = vunpack.c.h.b16 %v509
        %v513 = vpack.c.b16 %v511, %v511
        %v514 = vpack.c.b16 %v512, %v512
        %vm517 = vcmask 125952
        %518 = vst.msk [vmem:[%s241] sm:$0xf] %vm517, %v513
        %519 = vst.msk [vmem:[%s241 + $0x4] sm:$0xf] %vm517, %v514
        %s520 = smul.u32 2, %s14
        %p521 = scmp.lt.s32.totalorder %s520, 3
        %s522 = scalar_select %p521, %s520, 3
        %s523 = smul.addr %s522, 4
        %s524 = scalar_lea.vmem %s3, %s523
        // Predicated region
        $region74: #{baseline_cnn_forward.4} parent=68 // pred_check
          %p525 = pneg %p100
        $region75: #{baseline_cnn_forward.4} parent=68 // pred_check_branch
          %527 = sbr.rel (%p525) target = $region77
        $region76: #{baseline_cnn_forward.4} parent=68 // pred_region
          %s528 = smul.u32 2, %s14
        $region77: #{baseline_cnn_forward.4} parent=68 // pred_fallthru
          _
      $region69: #{baseline_cnn_forward.4} parent=5 // pred_fallthru
        _
      %p529 = scmp.le.s32.totalorder 2, %s9
      // Predicated region
      $region78: #{baseline_cnn_forward.4} parent=5 // pred_check
        %p530 = pneg %p529
      $region79: #{baseline_cnn_forward.4} parent=5 // pred_check_branch
        %532 = sbr.rel (%p530) target = $region81
      $region80: #{baseline_cnn_forward.4} parent=5 // pred_region
        %s533 = ssub.s32 %s9, 2
        // Predicated region
        $region82: #{baseline_cnn_forward.4} parent=80 // pred_check
          %p534 = pneg %p106
        $region83: #{baseline_cnn_forward.4} parent=80 // pred_check_branch
          %536 = sbr.rel (%p534) target = $region85
        $region84: #{baseline_cnn_forward.4} parent=80 // pred_region
          %s537 = smul.u32 2, %s15
          %p538 = scmp.lt.s32.totalorder %s537, 3
          %s539 = scalar_select %p538, %s537, 3
          %s540 = smul.addr %s539, 4
          %s541 = scalar_lea.vmem %s3, %s540
        $region85: #{baseline_cnn_forward.4} parent=80 // pred_fallthru
          _
      $region81: #{baseline_cnn_forward.4} parent=5 // pred_fallthru
        _
    $region6: #{baseline_cnn_forward.4} parent=1 // loop_footer
      %s13 = sadd.s32 1, %s9
    $region7: #{baseline_cnn_forward.4} parent=1 // loop_footer_branch
      %8 = sbr.rel target = $region3
    $region8: #{baseline_cnn_forward.4} parent=1 // loop_exit
      _

// kernel: baseline_cnn_forward.5
$region0: #{baseline_cnn_forward.5}
  #allocation0 [shape = 'u32[]', space=smem, size = 0x4, offset = 0x4, fixed_abs, tag = 'smem constant byte address 0x4 - core index']
  #allocation1 [shape = 'u32[144,128]{1,0:T(1,128)}', space=vmem, size = 0x12000, scoped, tag = 'internal scratch']
  %s0 = inlined_call_operand.vmem [shape: bf16[2,256], index: 0, kind: input, shape index: {}]
  %s1 = inlined_call_operand.vmem [shape: bf16[256,128], index: 1, kind: input, shape index: {}]
  %s2 = inlined_call_operand.vmem [shape: f32[1,128], index: 2, kind: input, shape index: {}]
  %s3 = inlined_call_operand.vmem [shape: bf16[128,10], index: 3, kind: input, shape index: {}]
  %s4 = inlined_call_operand.vmem [shape: f32[1,10], index: 4, kind: input, shape index: {}]
  %s5 = inlined_call_operand.hbm [shape: f32[2,10], index: 5, kind: output, shape index: {}]
  %s6 = sld [smem:[#allocation0]]
  $region30: #{baseline_cnn_forward.5} parent=0
    _
  %s8 = ssub.s32 1, %s6
  %s9 = scalar_select 0, %s8, %s6
  $region1: #{baseline_cnn_forward.5} parent=0
    #allocation2 [shape = 'u8[1024]{0}', space=vmem, size = 0x400, scoped, tag = 'output window, operand 0, single buffered']
    #allocation3 [shape = 's32[1]{0}', space=sflag, size = 0x4, scoped, tag = 'scoped memory for baseline_cnn_forward.5']
    %10 = vsyncpa [#allocation3], 0
    // Predicated region
    $region2: #{baseline_cnn_forward.5} parent=1 // pred_check
      _
    $region3: #{baseline_cnn_forward.5} parent=1 // pred_check_branch
      %12 = sbr.rel (0) target = $region5
    $region4: #{baseline_cnn_forward.5} parent=1 // pred_region
      _
    $region5: #{baseline_cnn_forward.5} parent=1 // pred_fallthru
      _
    // Predicated region
    $region6: #{baseline_cnn_forward.5} parent=1 // pred_check
      _
    $region7: #{baseline_cnn_forward.5} parent=1 // pred_check_branch
      %14 = sbr.rel (0) target = $region9
    $region8: #{baseline_cnn_forward.5} parent=1 // pred_region
      _
    $region9: #{baseline_cnn_forward.5} parent=1 // pred_fallthru
      _
    // Predicated region
    $region10: #{baseline_cnn_forward.5} parent=1 // pred_check
      _
    $region11: #{baseline_cnn_forward.5} parent=1 // pred_check_branch
      %16 = sbr.rel (0) target = $region13
    $region12: #{baseline_cnn_forward.5} parent=1 // pred_region
      _
    $region13: #{baseline_cnn_forward.5} parent=1 // pred_fallthru
      _
    // Predicated region
    $region14: #{baseline_cnn_forward.5} parent=1 // pred_check
      _
    $region15: #{baseline_cnn_forward.5} parent=1 // pred_check_branch
      %18 = sbr.rel (0) target = $region17
    $region16: #{baseline_cnn_forward.5} parent=1 // pred_region
      _
    $region17: #{baseline_cnn_forward.5} parent=1 // pred_fallthru
      _
    // Predicated region
    $region18: #{baseline_cnn_forward.5} parent=1 // pred_check
      _
    $region19: #{baseline_cnn_forward.5} parent=1 // pred_check_branch
      %20 = sbr.rel (0) target = $region21
    $region20: #{baseline_cnn_forward.5} parent=1 // pred_region
      _
    $region21: #{baseline_cnn_forward.5} parent=1 // pred_fallthru
      _
    %v22 = vld [vmem:[%s0] sm:$0x3]
    %v23 = vld [vmem:[%s1] sm:$0xf]
    %v24 = vld [vmem:[%s1 + $0x4] sm:$0xf]
    %v25 = vld [vmem:[%s1 + $0x8] sm:$0xf]
    %v26 = vld [vmem:[%s1 + $0xc] sm:$0xf]
    %v27 = vld [vmem:[%s1 + $0x10] sm:$0xf]
    %v28 = vld [vmem:[%s1 + $0x14] sm:$0xf]
    %v29 = vld [vmem:[%s1 + $0x18] sm:$0xf]
    %v30 = vld [vmem:[%s1 + $0x1c] sm:$0xf]
    %v31 = vld [vmem:[%s1 + $0x20] sm:$0xf]
    %v32 = vld [vmem:[%s1 + $0x24] sm:$0xf]
    %v33 = vld [vmem:[%s1 + $0x28] sm:$0xf]
    %v34 = vld [vmem:[%s1 + $0x2c] sm:$0xf]
    %v35 = vld [vmem:[%s1 + $0x30] sm:$0xf]
    %v36 = vld [vmem:[%s1 + $0x34] sm:$0xf]
    %v37 = vld [vmem:[%s1 + $0x38] sm:$0xf]
    %v38 = vld [vmem:[%s1 + $0x3c] sm:$0xf]
    %v39 = vld [vmem:[%s1 + $0x40] sm:$0xf]
    %v40 = vld [vmem:[%s1 + $0x44] sm:$0xf]
    %v41 = vld [vmem:[%s1 + $0x48] sm:$0xf]
    %v42 = vld [vmem:[%s1 + $0x4c] sm:$0xf]
    %v43 = vld [vmem:[%s1 + $0x50] sm:$0xf]
    %v44 = vld [vmem:[%s1 + $0x54] sm:$0xf]
    %v45 = vld [vmem:[%s1 + $0x58] sm:$0xf]
    %v46 = vld [vmem:[%s1 + $0x5c] sm:$0xf]
    %v47 = vld [vmem:[%s1 + $0x60] sm:$0xf]
    %v48 = vld [vmem:[%s1 + $0x64] sm:$0xf]
    %v49 = vld [vmem:[%s1 + $0x68] sm:$0xf]
    %v50 = vld [vmem:[%s1 + $0x6c] sm:$0xf]
    %v51 = vld [vmem:[%s1 + $0x70] sm:$0xf]
    %v52 = vld [vmem:[%s1 + $0x74] sm:$0xf]
    %v53 = vld [vmem:[%s1 + $0x78] sm:$0xf]
    %v54 = vld [vmem:[%s1 + $0x7c] sm:$0xf]
    %v55 = vld [vmem:[%s2] sm:$0x1]
    %v57 = vlaneseq
    %v58 = vshrl.u32 %v57, 7
    %v59 = vsub.s32 0, %v58
    %v60 = vrot.slane %v55, %v59
    %v64 = vunpack.c.l.s4 1966171168
    %v65 = vunpack.c.0.s8 %v64
    %v66 = vlaneseq
    %v67 = vshrl.u32 %v66, 7
    %v68 = vsub.s32 %v65, %v67
    %v69 = vrot.slane %v22, %v68
    %v70 = vcombine.high %v69, %v69
    %v72 = vunpack.c.l.s4 1966171168
    %v73 = vunpack.c.0.s8 %v72
    %v74 = vlaneseq
    %v75 = vshrl.u32 %v74, 7
    %v76 = vsub.s32 %v73, %v75
    %v77 = vrot.slane %v69, %v76
    %v79 = vunpack.c.l.s4 1966171168
    %v80 = vunpack.c.0.s8 %v79
    %v81 = vlaneseq
    %v82 = vshrl.u32 %v81, 7
    %v83 = vsub.s32 %v80, %v82
    %v84 = vrot.slane %v70, %v83
    %v119 = vunpack.c.l.b16 %v23
    %v120 = vunpack.c.l.b16 %v24
    %v121 = vunpack.c.l.b16 %v25
    %v122 = vunpack.c.l.b16 %v26
    %v123 = vunpack.c.l.b16 %v27
    %v124 = vunpack.c.l.b16 %v28
    %v125 = vunpack.c.l.b16 %v29
    %v126 = vunpack.c.l.b16 %v30
    %v127 = vunpack.c.l.b16 %v31
    %v128 = vunpack.c.l.b16 %v32
    %v129 = vunpack.c.l.b16 %v33
    %v130 = vunpack.c.l.b16 %v34
    %v131 = vunpack.c.l.b16 %v35
    %v132 = vunpack.c.l.b16 %v36
    %v133 = vunpack.c.l.b16 %v37
    %v134 = vunpack.c.l.b16 %v38
    %v135 = vunpack.c.l.b16 %v39
    %v136 = vunpack.c.l.b16 %v40
    %v137 = vunpack.c.l.b16 %v41
    %v138 = vunpack.c.l.b16 %v42
    %v139 = vunpack.c.l.b16 %v43
    %v140 = vunpack.c.l.b16 %v44
    %v141 = vunpack.c.l.b16 %v45
    %v142 = vunpack.c.l.b16 %v46
    %v143 = vunpack.c.l.b16 %v47
    %v144 = vunpack.c.l.b16 %v48
    %v145 = vunpack.c.l.b16 %v49
    %v146 = vunpack.c.l.b16 %v50
    %v147 = vunpack.c.l.b16 %v51
    %v148 = vunpack.c.l.b16 %v52
    %v149 = vunpack.c.l.b16 %v53
    %v150 = vunpack.c.l.b16 %v54
    %v151 = vpack.c.b16 %v120, %v119
    %v152 = vpack.c.b16 %v122, %v121
    %v153 = vpack.c.b16 %v124, %v123
    %v154 = vpack.c.b16 %v126, %v125
    %v155 = vpack.c.b16 %v128, %v127
    %v156 = vpack.c.b16 %v130, %v129
    %v157 = vpack.c.b16 %v132, %v131
    %v158 = vpack.c.b16 %v134, %v133
    %v159 = vpack.c.b16 %v136, %v135
    %v160 = vpack.c.b16 %v138, %v137
    %v161 = vpack.c.b16 %v140, %v139
    %v162 = vpack.c.b16 %v142, %v141
    %v163 = vpack.c.b16 %v144, %v143
    %v164 = vpack.c.b16 %v146, %v145
    %v165 = vpack.c.b16 %v148, %v147
    %v166 = vpack.c.b16 %v150, %v149
    %183 = vmatprep.subr.bf16.mxu0 0
    %184 = vmatpush1.bf16.msra.mxu0 %v151
    %185 = vmatprep.subr.bf16.mxu0 0
    %186 = vmatpush1.bf16.msra.mxu0 %v152
    %187 = vmatprep.subr.bf16.mxu0 0
    %188 = vmatpush1.bf16.msra.mxu0 %v153
    %189 = vmatprep.subr.bf16.mxu0 0
    %190 = vmatpush1.bf16.msra.mxu0 %v154
    %191 = vmatprep.subr.bf16.mxu0 0
    %192 = vmatpush1.bf16.msra.mxu0 %v155
    %193 = vmatprep.subr.bf16.mxu0 0
    %194 = vmatpush1.bf16.msra.mxu0 %v156
    %195 = vmatprep.subr.bf16.mxu0 0
    %196 = vmatpush1.bf16.msra.mxu0 %v157
    %197 = vmatprep.subr.bf16.mxu0 0
    %198 = vmatpush1.bf16.msra.mxu0 %v158
    %199 = vmatprep.subr.bf16.mxu0 0
    %200 = vmatpush1.bf16.msra.mxu0 %v159
    %201 = vmatprep.subr.bf16.mxu0 0
    %202 = vmatpush1.bf16.msra.mxu0 %v160
    %203 = vmatprep.subr.bf16.mxu0 0
    %204 = vmatpush1.bf16.msra.mxu0 %v161
    %205 = vmatprep.subr.bf16.mxu0 0
    %206 = vmatpush1.bf16.msra.mxu0 %v162
    %207 = vmatprep.subr.bf16.mxu0 0
    %208 = vmatpush1.bf16.msra.mxu0 %v163
    %209 = vmatprep.subr.bf16.mxu0 0
    %210 = vmatpush1.bf16.msra.mxu0 %v164
    %211 = vmatprep.subr.bf16.mxu0 0
    %212 = vmatpush1.bf16.msra.mxu0 %v165
    %213 = vmatprep.subr.bf16.mxu0 0
    %214 = vmatpush1.bf16.msra.mxu0 %v166
    %215 = vmatprep.mubr.bf16.mxu0 %v84
    %216 = vmatmul.mubr.bf16.gmra.mrb[0].mxu0 %v77
    %v217 = vpop.f32.mrb[0].mxu0
    %v218 = vadd.f32 %v60, %v217
    %v219 = vpop.f32.mrb[0].mxu0
    %v220 = vpop.f32.mrb[0].mxu0
    %v221 = vpop.f32.mrb[0].mxu0
    %222 = vdwg.mxu0
    %v223 = vmax.f32 %v218, 0.0
    %v224 = vpack.c.bf16 %v223, %v223
    %v225 = vld [vmem:[%s3] sm:$0xf]
    %v226 = vld [vmem:[%s3 + $0x4] sm:$0xf]
    %v227 = vld [vmem:[%s3 + $0x8] sm:$0xf]
    %v228 = vld [vmem:[%s3 + $0xc] sm:$0xf]
    %v229 = vld [vmem:[%s3 + $0x10] sm:$0xf]
    %v230 = vld [vmem:[%s3 + $0x14] sm:$0xf]
    %v231 = vld [vmem:[%s3 + $0x18] sm:$0xf]
    %v232 = vld [vmem:[%s3 + $0x1c] sm:$0xf]
    %v233 = vld [vmem:[%s3 + $0x20] sm:$0xf]
    %v234 = vld [vmem:[%s3 + $0x24] sm:$0xf]
    %v235 = vld [vmem:[%s3 + $0x28] sm:$0xf]
    %v236 = vld [vmem:[%s3 + $0x2c] sm:$0xf]
    %v237 = vld [vmem:[%s3 + $0x30] sm:$0xf]
    %v238 = vld [vmem:[%s3 + $0x34] sm:$0xf]
    %v239 = vld [vmem:[%s3 + $0x38] sm:$0xf]
    %v240 = vld [vmem:[%s3 + $0x3c] sm:$0xf]
    %v241 = vld [vmem:[%s4] sm:$0x1]
    %v243 = vlaneseq
    %v244 = vshrl.u32 %v243, 7
    %v245 = vsub.s32 0, %v244
    %v246 = vrot.slane %v241, %v245
    %v264 = vunpack.c.l.b16 %v225
    %v265 = vunpack.c.l.b16 %v226
    %v266 = vunpack.c.l.b16 %v227
    %v267 = vunpack.c.l.b16 %v228
    %v268 = vunpack.c.l.b16 %v229
    %v269 = vunpack.c.l.b16 %v230
    %v270 = vunpack.c.l.b16 %v231
    %v271 = vunpack.c.l.b16 %v232
    %v272 = vunpack.c.l.b16 %v233
    %v273 = vunpack.c.l.b16 %v234
    %v274 = vunpack.c.l.b16 %v235
    %v275 = vunpack.c.l.b16 %v236
    %v276 = vunpack.c.l.b16 %v237
    %v277 = vunpack.c.l.b16 %v238
    %v278 = vunpack.c.l.b16 %v239
    %v279 = vunpack.c.l.b16 %v240
    %v280 = vpack.c.b16 %v265, %v264
    %v281 = vpack.c.b16 %v267, %v266
    %v282 = vpack.c.b16 %v269, %v268
    %v283 = vpack.c.b16 %v271, %v270
    %v284 = vpack.c.b16 %v273, %v272
    %v285 = vpack.c.b16 %v275, %v274
    %v286 = vpack.c.b16 %v277, %v276
    %v287 = vpack.c.b16 %v279, %v278
    %296 = vmatprep.subr.bf16.mxu0 0
    %297 = vmatpush1.bf16.msra.mxu0 %v280
    %298 = vmatprep.subr.bf16.mxu0 0
    %299 = vmatpush1.bf16.msra.mxu0 %v281
    %300 = vmatprep.subr.bf16.mxu0 0
    %301 = vmatpush1.bf16.msra.mxu0 %v282
    %302 = vmatprep.subr.bf16.mxu0 0
    %303 = vmatpush1.bf16.msra.mxu0 %v283
    %304 = vmatprep.subr.bf16.mxu0 0
    %305 = vmatpush1.bf16.msra.mxu0 %v284
    %306 = vmatprep.subr.bf16.mxu0 0
    %307 = vmatpush1.bf16.msra.mxu0 %v285
    %308 = vmatprep.subr.bf16.mxu0 0
    %309 = vmatpush1.bf16.msra.mxu0 %v286
    %310 = vmatprep.subr.bf16.mxu0 0
    %311 = vmatpush1.bf16.msra.mxu0 %v287
    %312 = vmatprep.subr.bf16.mxu0 0
    %313 = vmatpush1.bf16.msra.mxu0 0
    %314 = vmatprep.subr.bf16.mxu0 0
    %315 = vmatpush1.bf16.msra.mxu0 0
    %316 = vmatprep.subr.bf16.mxu0 0
    %317 = vmatpush1.bf16.msra.mxu0 0
    %318 = vmatprep.subr.bf16.mxu0 0
    %319 = vmatpush1.bf16.msra.mxu0 0
    %320 = vmatprep.subr.bf16.mxu0 0
    %321 = vmatpush1.bf16.msra.mxu0 0
    %322 = vmatprep.subr.bf16.mxu0 0
    %323 = vmatpush1.bf16.msra.mxu0 0
    %324 = vmatprep.subr.bf16.mxu0 0
    %325 = vmatpush1.bf16.msra.mxu0 0
    %326 = vmatprep.subr.bf16.mxu0 0
    %327 = vmatpush1.bf16.msra.mxu0 0
    %328 = vmatprep.mubr.bf16.mxu0 0
    %329 = vmatmul.mubr.bf16.gmra.mrb[0].mxu0 %v224
    %v330 = vpop.f32.mrb[0].mxu0
    %v331 = vadd.f32 %v246, %v330
    %v332 = vpop.f32.mrb[0].mxu0
    %v333 = vpop.f32.mrb[0].mxu0
    %v334 = vpop.f32.mrb[0].mxu0
    %335 = vdwg.mxu0
    %vm336 = vcmask 74752
    %337 = vst.msk [vmem:[#allocation2] sm:$0x3] %vm336, %v331
    // Predicated region
    $region22: #{baseline_cnn_forward.5} parent=1 // pred_check
      _
    $region23: #{baseline_cnn_forward.5} parent=1 // pred_check_branch
      %339 = sbr.rel (0) target = $region25
    $region24: #{baseline_cnn_forward.5} parent=1 // pred_region
      %s341 = ssub.s32 32, 32
      %342 = vsyncadd [#allocation3], %s341
      %s344 = sshll.u32 [#allocation2], 4
      %s345 = int_to_ptr.vmem [resolvable:$true] %s344
      %347 = dma.vmem_to_hbm [thread:$0]  %s345, 32, %s5, [#allocation3]
    $region25: #{baseline_cnn_forward.5} parent=1 // pred_fallthru
      _
    // Predicated region
    $region26: #{baseline_cnn_forward.5} parent=1 // pred_check
      _
    $region27: #{baseline_cnn_forward.5} parent=1 // pred_check_branch
      %349 = sbr.rel (0) target = $region29
    $region28: #{baseline_cnn_forward.5} parent=1 // pred_region
      %350 = dma.done [#allocation3], 32
    $region29: #{baseline_cnn_forward.5} parent=1 // pred_fallthru
      _
    %351 = vsyncpa [#allocation3], 1

</llo_original>
